<compile_context>
chip_gen: v7x
topology: tpu7x:2x2x1
jax: 0.10.0
libtpu: 0.0.40
codegen_flags: <defaults>
</compile_context>

<pallas_src>
import functools

import numpy as np
import jax
import jax.numpy as jnp
from jax.experimental import pallas as pl
from jax.experimental.pallas import tpu as pltpu


def _round_up(x, m):
    return (x + m - 1) // m * m


# ----------------------------------------------------------------------------
# Deterministic parameter / weight construction (GFB.initialize equivalent)
# ----------------------------------------------------------------------------
def gabor_kernel(frequency, sigma_x, sigma_y, theta, offset, ks):
    """Standard VOneNet gabor kernel (cross-correlation filter, ks x ks)."""
    w = ks // 2
    grid_val = np.arange(-w, w + 1, dtype=np.float64)
    x, y = np.meshgrid(grid_val, grid_val, indexing="ij")
    rotx = x * np.cos(theta) + y * np.sin(theta)
    roty = -x * np.sin(theta) + y * np.cos(theta)
    g = np.exp(-0.5 * (rotx ** 2 / sigma_x ** 2 + roty ** 2 / sigma_y ** 2))
    g /= 2.0 * np.pi * sigma_x * sigma_y
    g *= np.cos(2.0 * np.pi * frequency * rotx + offset)
    return g.astype(np.float32)


def build_gfb_weights(sf, theta, sigx, sigy, phase, in_channels, out_channels, ksize):
    """GFB.initialize: weight[i, :] = gabor_kernel(...) broadcast over in_channels."""
    w = np.zeros((out_channels, in_channels, ksize, ksize), dtype=np.float32)
    for i in range(out_channels):
        g = gabor_kernel(frequency=sf[i], sigma_x=sigx[i], sigma_y=sigy[i],
                         theta=theta[i], offset=phase[i], ks=ksize)
        w[i, :] = g  # same gabor copied across all input (color) channels
    return w


# ----------------------------------------------------------------------------
# Fused weight matrix: [ w_q0 * scale | w_q1_complex * k_exc/sqrt(2) ], K padded to 128.
#   scale = k_exc for simple columns, k_exc/sqrt(2) for complex columns (exact for
#   k_exc > 0: ReLU and sqrt(a^2+b^2) commute with a positive column scale).
# ----------------------------------------------------------------------------
def _build_fused_weight(w_q0, w_q1, simple_channels, k_exc):
    assert k_exc > 0, "k_exc must be > 0 (its scale is folded into the weight columns)"
    Cout, _, k, _ = w_q0.shape
    complex_channels = Cout - simple_channels
    Kdim = k * k
    Kp = _round_up(Kdim, 128)

    # Gabors are identical across Cin -> keep only channel 0 (channel folding).
    w0 = np.asarray(w_q0)[:, 0].reshape(Cout, Kdim).astype(np.float32)
    w1 = np.asarray(w_q1)[:, 0].reshape(Cout, Kdim).astype(np.float32)

    col_scale = np.where(np.arange(Cout) < simple_channels,
                         np.float32(k_exc),
                         np.float32(k_exc / np.sqrt(2.0))).astype(np.float32)
    w0s = w0 * col_scale[:, None]
    w1c = w1[simple_channels:] * np.float32(k_exc / np.sqrt(2.0))

    aligned = (simple_channels % 128 == 0) and (complex_channels % 128 == 0)
    if aligned:
        # Compact layout: [ q0 (Cout) | q1 complex (complex) ] -- no dead columns.
        ncols = Cout + complex_channels
        W = np.zeros((Kp, ncols), dtype=np.float32)
        W[:Kdim, :Cout] = w0s.T
        W[:Kdim, Cout:] = w1c.T
        out_cols = Cout                       # already lane-dense
    else:
        # Two 128-aligned halves so all in-kernel slices stay lane-aligned.
        cpad = _round_up(Cout, 128)
        W = np.zeros((Kp, 2 * cpad), dtype=np.float32)
        W[:Kdim, :Cout] = w0s.T
        W[:Kdim, cpad + simple_channels:cpad + Cout] = w1c.T
        out_cols = cpad                       # lane-dense padded output, sliced outside
    return jnp.asarray(W, dtype=jnp.bfloat16), aligned, out_cols, Kp


# ----------------------------------------------------------------------------
# Pallas kernel: one fused MXU matmul + VOne simple/complex nonlinearity
# ----------------------------------------------------------------------------
def _vone_kernel(x_ref, w_ref, o_ref, *, simple_channels, cout, aligned):
    xb = x_ref[...]                                               # (tm, Kp) bf16
    r = jnp.dot(xb, w_ref[...], preferred_element_type=jnp.float32)
    if aligned:
        # Static, lane-aligned split (real VOneNet: simple=complex multiples of 128).
        s = jnp.maximum(r[:, :simple_channels], 0.0)              # simple cells
        a = r[:, simple_channels:cout]                            # q0, complex cells
        b = r[:, cout:]                                           # q1, complex cells
        o_ref[:, :simple_channels] = s.astype(o_ref.dtype)
        o_ref[:, simple_channels:] = jnp.sqrt(a * a + b * b).astype(o_ref.dtype)
    else:
        # Generic path: two 128-aligned halves + per-column select.
        cpad = o_ref.shape[1]
        rA = r[:, :cpad]                                          # q0 (padded)
        rB = r[:, cpad:]                                          # q1 complex (padded)
        ch = jax.lax.broadcasted_iota(jnp.int32, rA.shape, 1)
        o_ref[...] = jnp.where(ch < simple_channels,
                               jnp.maximum(rA, 0.0),
                               jnp.sqrt(rA * rA + rB * rB)).astype(o_ref.dtype)
    # noise_f with noise_mode=None reduces to ReLU -> no-op (outputs already >= 0).


def _make_pallas_call(kernel, Mp, out_cols, Kp, n_wcols, tm_eff, out_dtype,
                      weight_buffered):
    if weight_buffered:
        # Constant index_map -> weights stay resident; a single buffer is enough.
        w_spec = pl.BlockSpec((Kp, n_wcols), lambda i: (0, 0),
                              pipeline_mode=pl.Buffered(1))
    else:
        w_spec = pl.BlockSpec((Kp, n_wcols), lambda i: (0, 0))
    return pl.pallas_call(
        kernel,
        out_shape=jax.ShapeDtypeStruct((Mp, out_cols), out_dtype),
        grid=(Mp // tm_eff,),
        in_specs=[
            pl.BlockSpec((tm_eff, Kp), lambda i: (i, 0)),
            w_spec,
        ],
        out_specs=pl.BlockSpec((tm_eff, out_cols), lambda i: (i, 0)),
        compiler_params=pltpu.CompilerParams(
            dimension_semantics=("parallel",),
            vmem_limit_bytes=48 * 1024 * 1024),
    )


def _vone_forward_impl(x, w_mat, *, stride, simple_channels, cout, aligned, out_cols,
                       Kp, ksize, tm, channels_last, out_dtype, weight_buffered):
    N, Cin, H, W = x.shape
    p = ksize // 2
    Ho = (H + 2 * p - ksize) // stride + 1
    Wo = (W + 2 * p - ksize) // stride + 1
    M = N * Ho * Wo
    Kdim = ksize * ksize

    # ---- im2col glue (plain JAX), built lane-dense at (M, Kp) in ONE pass ----
    # Channel folding: conv(x, broadcast-gabor) == conv(sum_c x_c, gabor)  (exact).
    x_sum = jnp.sum(x, axis=1).astype(jnp.bfloat16)               # (N, H, W)
    xp = jnp.pad(x_sum, ((0, 0), (p, p), (p, p)))                 # (N, Hp, Wp) bf16
    cols = [xp[:, i:i + stride * Ho:stride, j:j + stride * Wo:stride][..., None]
            for i in range(ksize) for j in range(ksize)]
    if Kp > Kdim:
        cols.append(jnp.zeros((N, Ho, Wo, Kp - Kdim), jnp.bfloat16))
    pat = jnp.concatenate(cols, axis=-1).reshape(M, Kp)           # (M, Kp) bf16

    # ---- tiling: multiple of 16 (bf16 sublanes), >=2 grid steps when possible ----
    tm_eff = min(tm, _round_up(M, 16))
    n_steps = pl.cdiv(M, tm_eff)
    if n_steps < 2 and M >= 32:
        n_steps = 2                           # keep both v7x TensorCores busy
    tm_eff = _round_up(pl.cdiv(M, n_steps), 16)
    Mp = _round_up(M, tm_eff)
    if Mp != M:                               # only for shapes that don't divide evenly
        pat = jnp.pad(pat, ((0, Mp - M), (0, 0)))

    kernel = functools.partial(_vone_kernel, simple_channels=simple_channels,
                               cout=cout, aligned=aligned)
    out = _make_pallas_call(kernel, Mp, out_cols, Kp, w_mat.shape[1], tm_eff,
                            out_dtype, weight_buffered)(pat, w_mat)

    if Mp != M or out_cols != cout:
        out = out[:M, :cout]
    out = out.reshape(N, Ho, Wo, cout)
    if channels_last:
        return out                            # NHWC: no transpose at all (fast path)
    return out.transpose(0, 3, 1, 2)          # NCHW (torch semantics), bf16-cheap


# ----------------------------------------------------------------------------
# Module-like wrapper: packs / uploads the fused weight matrix exactly once.
# ----------------------------------------------------------------------------
class VOneBlockPallas:
    def __init__(self, w_q0, w_q1, *, stride, simple_channels, k_exc,
                 tm=1024, channels_last=False, out_dtype=jnp.bfloat16):
        assert k_exc > 0, "k_exc must be > 0"
        self.stride = int(stride)
        self.simple_channels = int(simple_channels)
        self.cout = int(w_q0.shape[0])
        self.ksize = int(w_q0.shape[-1])
        self.tm = int(tm)
        self.channels_last = bool(channels_last)
        self.out_dtype = out_dtype
        w_mat, self.aligned, self.out_cols, self.Kp = _build_fused_weight(
            w_q0, w_q1, self.simple_channels, k_exc)
        self.w_mat = jax.device_put(w_mat)    # uploaded once, reused across calls
        self._fwd = {}
        self._weight_buffered = None

    def _make_fwd(self, weight_buffered):
        impl = functools.partial(
            _vone_forward_impl, stride=self.stride, simple_channels=self.simple_channels,
            cout=self.cout, aligned=self.aligned, out_cols=self.out_cols, Kp=self.Kp,
            ksize=self.ksize, tm=self.tm, channels_last=self.channels_last,
            out_dtype=self.out_dtype, weight_buffered=weight_buffered)
        return jax.jit(impl)

    def __call__(self, x):
        if self._weight_buffered is None:
            # Try the single-buffered resident-weight spec; fall back if rejected.
            try:
                fwd = self._make_fwd(True)
                out = fwd(x, self.w_mat)
                jax.block_until_ready(out)
                self._weight_buffered = True
                self._fwd[True] = fwd
                return out
            except Exception:
                self._weight_buffered = False
        wb = self._weight_buffered
        if wb not in self._fwd:
            self._fwd[wb] = self._make_fwd(wb)
        return self._fwd[wb](x, self.w_mat)


def vone_block_forward(x, w_q0, w_q1, *, stride, simple_channels, k_exc,
                       tm=1024, channels_last=False, out_dtype=jnp.bfloat16):
    """One-off functional wrapper; prefer VOneBlockPallas to cache the packed weights."""
    block = VOneBlockPallas(w_q0, w_q1, stride=stride, simple_channels=simple_channels,
                            k_exc=k_exc, tm=tm, channels_last=channels_last,
                            out_dtype=out_dtype)
    return block(x)


# ----------------------------------------------------------------------------
# Pure-JAX f32 reference (for correctness check)
# ----------------------------------------------------------------------------
def vone_block_reference(x, w_q0, w_q1, *, stride, simple_channels, k_exc):
    p = w_q0.shape[-1] // 2
    dn = jax.lax.conv_dimension_numbers(x.shape, w_q0.shape, ("NCHW", "OIHW", "NCHW"))
    s0 = jax.lax.conv_general_dilated(x, jnp.asarray(w_q0), (stride, stride),
                                      [(p, p), (p, p)], dimension_numbers=dn,
                                      precision=jax.lax.Precision.HIGHEST)
    s1 = jax.lax.conv_general_dilated(x, jnp.asarray(w_q1), (stride, stride),
                                      [(p, p), (p, p)], dimension_numbers=dn,
                                      precision=jax.lax.Precision.HIGHEST)
    c = jnp.sqrt(s0[:, simple_channels:] ** 2 + s1[:, simple_channels:] ** 2) / np.sqrt(2.0)
    s = jnp.maximum(s0[:, :simple_channels], 0.0)
    out = k_exc * jnp.concatenate([s, c], axis=1)
    return jnp.maximum(out, 0.0)  # noise_mode=None -> ReLU


# ----------------------------------------------------------------------------
if __name__ == "__main__":
    def make_params(key, cout):
        ks = jax.random.split(key, 5)
        sf = np.asarray(jax.random.uniform(ks[0], (cout,), minval=0.05, maxval=0.45))
        theta = np.asarray(jax.random.uniform(ks[1], (cout,), minval=0.0, maxval=np.pi))
        sigx = np.asarray(jax.random.uniform(ks[2], (cout,), minval=1.0, maxval=4.0))
        sigy = np.asarray(jax.random.uniform(ks[3], (cout,), minval=1.0, maxval=4.0))
        phase = np.asarray(jax.random.uniform(ks[4], (cout,), minval=0.0, maxval=2.0 * np.pi))
        return sf, theta, sigx, sigy, phase

    def run_case(key, N, Cin, H, W, simple_channels, complex_channels, ksize, stride,
                 k_exc, channels_last, out_dtype):
        kparam, kx = jax.random.split(key)
        Cout = simple_channels + complex_channels
        sf, theta, sigx, sigy, phase = make_params(kparam, Cout)
        # simple_conv_q0 uses `phase`, simple_conv_q1 uses `phase + pi/2`
        w_q0 = build_gfb_weights(sf, theta, sigx, sigy, phase, Cin, Cout, ksize)
        w_q1 = build_gfb_weights(sf, theta, sigx, sigy, phase + np.pi / 2.0, Cin, Cout, ksize)
        x = jax.random.normal(kx, (N, Cin, H, W), dtype=jnp.float32)

        block = VOneBlockPallas(w_q0, w_q1, stride=stride, simple_channels=simple_channels,
                                k_exc=k_exc, channels_last=channels_last,
                                out_dtype=out_dtype)
        out = jax.block_until_ready(block(x))

        ref = vone_block_reference(x, w_q0, w_q1, stride=stride,
                                   simple_channels=simple_channels, k_exc=k_exc)
        if channels_last:
            ref = jnp.transpose(ref, (0, 2, 3, 1))
            exp_shape = (N, H // stride, W // stride, Cout)
        else:
            exp_shape = (N, Cout, H // stride, W // stride)
        assert out.shape == exp_shape, out.shape
        assert out.dtype == np.dtype(out_dtype), out.dtype
        out_np = np.asarray(jnp.asarray(out, jnp.float32))
        ref_np = np.asarray(jnp.asarray(ref, jnp.float32))
        err = float(np.max(np.abs(out_np - ref_np)))
        # bf16 MXU operands (and bf16 output) vs f32 reference -> percent-level tolerance.
        tol = 3e-2 * float(np.max(np.abs(ref_np))) + 5e-2
        assert err <= tol, f"mismatch vs reference: max abs err {err} > tol {tol}"

    key = jax.random.PRNGKey(0)
    k1, k2 = jax.random.split(key)

    # Small RGB config -> generic (iota/where) epilogue, NCHW f32 output path.
    run_case(k1, N=2, Cin=3, H=32, W=32, simple_channels=8, complex_channels=8,
             ksize=7, stride=2, k_exc=25.0, channels_last=False, out_dtype=jnp.float32)
    # Lane-aligned config (simple/complex multiples of 128, like real VOneNet) ->
    # static-split epilogue, compact weight layout, bf16 + channels_last fast path.
    run_case(k2, N=1, Cin=1, H=16, W=16, simple_channels=128, complex_channels=128,
             ksize=7, stride=2, k_exc=25.0, channels_last=True, out_dtype=jnp.bfloat16)

    print("KERNEL_OK")
</pallas_src>

<mosaic_0001>
module attributes {stable_mosaic.version = 11 : i64} {
  func.func @_vone_kernel(%arg0: i32, %arg1: memref<256x128xbf16, #tpu.memory_space<vmem>>, %arg2: memref<128x256xbf16, #tpu.memory_space<vmem>>, %arg3: memref<256x128xf32, #tpu.memory_space<vmem>>) attributes {dimension_semantics = [#tpu.dimension_semantics<parallel>], iteration_bounds = array<i64: 2>, scalar_prefetch = 0 : i64, scratch_operands = 0 : i64, tpu.core_type = #tpu.core_type<tc>, window_params = [{transform_indices = @transform_0, window_bounds = array<i64: 256, 128>}, {pipeline_mode = #tpu.pipeline_mode<synchronous>, transform_indices = @transform_1, window_bounds = array<i64: 128, 256>}, {transform_indices = @transform_2, window_bounds = array<i64: 256, 128>}]} {
    %c0 = arith.constant 0 : index
    %c0_0 = arith.constant 0 : index
    %0 = vector.load %arg1[%c0, %c0_0] : memref<256x128xbf16, #tpu.memory_space<vmem>>, vector<256x128xbf16>
    %c0_1 = arith.constant 0 : index
    %c0_2 = arith.constant 0 : index
    %1 = vector.load %arg2[%c0_1, %c0_2] : memref<128x256xbf16, #tpu.memory_space<vmem>>, vector<128x256xbf16>
    %cst = arith.constant dense<0.000000e+00> : vector<256x256xf32>
    %2 = tpu.matmul %0, %1, %cst {dimension_numbers = #tpu.dot_dimension_numbers<[1], [0], [0], [1], [0, 0, 1, 1], [], []>} : vector<256x128xbf16>, vector<128x256xbf16>, vector<256x256xf32> -> vector<256x256xf32>
    %3 = vector.extract_strided_slice %2 {offsets = [0, 0], sizes = [256, 128], strides = [1, 1]} : vector<256x256xf32> to vector<256x128xf32>
    %4 = vector.extract_strided_slice %2 {offsets = [0, 128], sizes = [256, 128], strides = [1, 1]} : vector<256x256xf32> to vector<256x128xf32>
    %5 = tpu.iota {dimensions = array<i32: 1>} : vector<256x128xi32>
    %c8_i32 = arith.constant 8 : i32
    %6 = vector.broadcast %c8_i32 : i32 to vector<256x128xi32>
    %7 = arith.cmpi slt, %5, %6 : vector<256x128xi32>
    %cst_3 = arith.constant 0.000000e+00 : f32
    %8 = vector.broadcast %cst_3 : f32 to vector<256x128xf32>
    %9 = arith.maximumf %3, %8 : vector<256x128xf32>
    %10 = arith.mulf %3, %3 : vector<256x128xf32>
    %11 = arith.mulf %4, %4 : vector<256x128xf32>
    %12 = arith.addf %10, %11 : vector<256x128xf32>
    %13 = math.sqrt %12 : vector<256x128xf32>
    %14 = arith.select %7, %9, %13 : vector<256x128xi1>, vector<256x128xf32>
    %c0_4 = arith.constant 0 : index
    %c0_5 = arith.constant 0 : index
    %15 = vector.load %arg3[%c0_4, %c0_5] : memref<256x128xf32, #tpu.memory_space<vmem>>, vector<256x128xf32>
    tpu.vector_store %arg3[%c0_4, %c0_5], %14 {strides = array<i32>} : memref<256x128xf32, #tpu.memory_space<vmem>>, vector<256x128xf32>,
    return
  }
  func.func @transform_0(%arg0: i32) -> (i32, i32) {
    %c0_i32 = arith.constant 0 : i32
    %c0_i32_0 = arith.constant 0 : i32
    return %arg0, %c0_i32 : i32, i32
  }
  func.func @transform_1(%arg0: i32) -> (i32, i32) {
    %c0_i32 = arith.constant 0 : i32
    %c0_i32_0 = arith.constant 0 : i32
    %c0_i32_1 = arith.constant 0 : i32
    return %c0_i32, %c0_i32_0 : i32, i32
  }
  func.func @transform_2(%arg0: i32) -> (i32, i32) {
    %c0_i32 = arith.constant 0 : i32
    %c0_i32_0 = arith.constant 0 : i32
    return %arg0, %c0_i32 : i32, i32
  }
}

module attributes {stable_mosaic.version = 11 : i64} {
  func.func @_vone_kernel(%arg0: i32, %arg1: memref<256x128xbf16, #tpu.memory_space<vmem>>, %arg2: memref<128x256xbf16, #tpu.memory_space<vmem>>, %arg3: memref<256x128xf32, #tpu.memory_space<vmem>>) attributes {dimension_semantics = [#tpu.dimension_semantics<parallel>], iteration_bounds = array<i64: 2>, scalar_prefetch = 0 : i64, scratch_operands = 0 : i64, tpu.core_type = #tpu.core_type<tc>, window_params = [{transform_indices = @transform_0, window_bounds = array<i64: 256, 128>}, {pipeline_mode = #tpu.pipeline_mode<synchronous>, transform_indices = @transform_1, window_bounds = array<i64: 128, 256>}, {transform_indices = @transform_2, window_bounds = array<i64: 256, 128>}]} {
    %c0 = arith.constant 0 : index
    %c0_0 = arith.constant 0 : index
    %0 = vector.load %arg1[%c0, %c0_0] : memref<256x128xbf16, #tpu.memory_space<vmem>>, vector<256x128xbf16>
    %c0_1 = arith.constant 0 : index
    %c0_2 = arith.constant 0 : index
    %1 = vector.load %arg2[%c0_1, %c0_2] : memref<128x256xbf16, #tpu.memory_space<vmem>>, vector<128x256xbf16>
    %cst = arith.constant dense<0.000000e+00> : vector<256x256xf32>
    %2 = tpu.matmul %0, %1, %cst {dimension_numbers = #tpu.dot_dimension_numbers<[1], [0], [0], [1], [0, 0, 1, 1], [], []>} : vector<256x128xbf16>, vector<128x256xbf16>, vector<256x256xf32> -> vector<256x256xf32>
    %3 = vector.extract_strided_slice %2 {offsets = [0, 0], sizes = [256, 128], strides = [1, 1]} : vector<256x256xf32> to vector<256x128xf32>
    %4 = vector.extract_strided_slice %2 {offsets = [0, 128], sizes = [256, 128], strides = [1, 1]} : vector<256x256xf32> to vector<256x128xf32>
    %5 = tpu.iota {dimensions = array<i32: 1>} : vector<256x128xi32>
    %c8_i32 = arith.constant 8 : i32
    %6 = vector.broadcast %c8_i32 : i32 to vector<256x128xi32>
    %7 = arith.cmpi slt, %5, %6 : vector<256x128xi32>
    %cst_3 = arith.constant 0.000000e+00 : f32
    %8 = vector.broadcast %cst_3 : f32 to vector<256x128xf32>
    %9 = arith.maximumf %3, %8 : vector<256x128xf32>
    %10 = arith.mulf %3, %3 : vector<256x128xf32>
    %11 = arith.mulf %4, %4 : vector<256x128xf32>
    %12 = arith.addf %10, %11 : vector<256x128xf32>
    %13 = math.sqrt %12 : vector<256x128xf32>
    %14 = arith.select %7, %9, %13 : vector<256x128xi1>, vector<256x128xf32>
    %c0_4 = arith.constant 0 : index
    %c0_5 = arith.constant 0 : index
    %15 = vector.load %arg3[%c0_4, %c0_5] : memref<256x128xf32, #tpu.memory_space<vmem>>, vector<256x128xf32>
    tpu.vector_store %arg3[%c0_4, %c0_5], %14 {strides = array<i32>} : memref<256x128xf32, #tpu.memory_space<vmem>>, vector<256x128xf32>,
    return
  }
  func.func @transform_0(%arg0: i32) -> (i32, i32) {
    %c0_i32 = arith.constant 0 : i32
    %c0_i32_0 = arith.constant 0 : i32
    return %arg0, %c0_i32 : i32, i32
  }
  func.func @transform_1(%arg0: i32) -> (i32, i32) {
    %c0_i32 = arith.constant 0 : i32
    %c0_i32_0 = arith.constant 0 : i32
    %c0_i32_1 = arith.constant 0 : i32
    return %c0_i32, %c0_i32_0 : i32, i32
  }
  func.func @transform_2(%arg0: i32) -> (i32, i32) {
    %c0_i32 = arith.constant 0 : i32
    %c0_i32_0 = arith.constant 0 : i32
    return %arg0, %c0_i32 : i32, i32
  }
}

</mosaic_0001>

<llo_original>
// kernel: _vone_forward_impl.1
$region0: #{_vone_forward_impl.1}
  #allocation0 [shape = 'u32[]', space=smem, size = 0x4, offset = 0x4, fixed_abs, tag = 'smem constant byte address 0x4 - core index']
  #allocation1 [shape = 'u32[144,128]{1,0:T(1,128)}', space=vmem, size = 0x12000, scoped, tag = 'internal scratch']
  %s0 = inlined_call_operand.vmem [shape: bf16[512,128], index: 0, kind: input, shape index: {}]
  %s1 = inlined_call_operand.vmem [shape: bf16[128,256], index: 1, kind: input, shape index: {}]
  %s2 = inlined_call_operand.vmem [shape: f32[512,128], index: 2, kind: output, shape index: {}]
  %s3 = sld [smem:[#allocation0]]
  $region41: #{_vone_forward_impl.1} parent=0
    _
  %s5 = ssub.s32 1, %s3
  %s6 = scalar_select 0, %s5, %s3
  loop: start=0, step=1, limit=4
  $region2: #{_vone_forward_impl.1} parent=0 // loop_pre_header
    _
  $region3: #{_vone_forward_impl.1} parent=0 // loop_header
    %s8 = sphi 0, %s12
    %p9 = scmp.ge.s32.totalorder %s8, 4
    %s18 = sphi 0, %s20
    %s21 = sphi 0, %s18
    %s22 = sphi 0, %s21
    %s38 = sphi 0, %s22
    %s42 = sphi 0, %s42
    %s44 = sphi 0, %s42
    %s45 = sphi 0, %s44
    %s59 = sphi 0, %s45
    %s65 = sphi 0, %s67
    %s68 = sphi 0, %s65
    %s69 = sphi 0, %s68
    %s85 = sphi 0, %s69
  $region4: #{_vone_forward_impl.1} parent=0 // loop_header_branch
    %11 = sbr.rel (%p9) target = $region8
  $region5: #{_vone_forward_impl.1} parent=0 // loop_body
    %s13 = ssub.s32 %s8, 1
    %s14 = ssub.s32 %s8, 2
    %s15 = sadd.s32 %s8, 1
    %s16 = ssub.s32 %s8, %s15
    %p17 = scmp.eq.s32.totalorder %s16, 0
    %s19 = sadd.s32 %s18, 1
    %s20 = scalar_select %p17, %s18, %s19
    %p23 = pneg %p17
    %p24 = scmp.eq.s32.totalorder %s8, 1
    %p25 = por %p23, %p24
    %p26 = scmp.ne.s32.totalorder %s18, %s21
    %p27 = scmp.eq.s32.totalorder %s8, 0
    %p28 = por %p26, %p27
    %p29 = scmp.ne.s32.totalorder %s18, %s21
    %p30 = scmp.eq.s32.totalorder %s13, 1
    %p31 = por %p29, %p30
    %p32 = scmp.ne.s32.totalorder %s21, %s22
    %p33 = scmp.eq.s32.totalorder %s13, 0
    %p34 = por %p32, %p33
    %p35 = scmp.ne.s32.totalorder %s21, %s22
    %p36 = scmp.eq.s32.totalorder %s14, 1
    %p37 = por %p35, %p36
    %p39 = scmp.ne.s32.totalorder %s22, %s38
    %p40 = scmp.eq.s32.totalorder %s14, 0
    %p41 = por %p39, %p40
    %s43 = sadd.s32 %s42, 1
    %p46 = scmp.eq.s32.totalorder %s8, 1
    %p47 = scmp.ne.s32.totalorder %s42, %s44
    %p48 = scmp.eq.s32.totalorder %s8, 0
    %p49 = por %p47, %p48
    %p50 = scmp.ne.s32.totalorder %s42, %s44
    %p51 = scmp.eq.s32.totalorder %s13, 1
    %p52 = por %p50, %p51
    %p53 = scmp.ne.s32.totalorder %s44, %s45
    %p54 = scmp.eq.s32.totalorder %s13, 0
    %p55 = por %p53, %p54
    %p56 = scmp.ne.s32.totalorder %s44, %s45
    %p57 = scmp.eq.s32.totalorder %s14, 1
    %p58 = por %p56, %p57
    %p60 = scmp.ne.s32.totalorder %s45, %s59
    %p61 = scmp.eq.s32.totalorder %s14, 0
    %p62 = por %p60, %p61
    %s63 = ssub.s32 %s8, %s15
    %p64 = scmp.eq.s32.totalorder %s63, 0
    %s66 = sadd.s32 %s65, 1
    %s67 = scalar_select %p64, %s65, %s66
    %p70 = pneg %p64
    %p71 = scmp.eq.s32.totalorder %s8, 1
    %p72 = por %p70, %p71
    %p73 = scmp.ne.s32.totalorder %s65, %s68
    %p74 = scmp.eq.s32.totalorder %s8, 0
    %p75 = por %p73, %p74
    %p76 = scmp.ne.s32.totalorder %s65, %s68
    %p77 = scmp.eq.s32.totalorder %s13, 1
    %p78 = por %p76, %p77
    %p79 = scmp.ne.s32.totalorder %s68, %s69
    %p80 = scmp.eq.s32.totalorder %s13, 0
    %p81 = por %p79, %p80
    %p82 = scmp.ne.s32.totalorder %s68, %s69
    %p83 = scmp.eq.s32.totalorder %s14, 1
    %p84 = por %p82, %p83
    %p86 = scmp.ne.s32.totalorder %s69, %s85
    %p87 = scmp.eq.s32.totalorder %s14, 0
    %p88 = por %p86, %p87
    %p89 = scmp.le.s32.totalorder 1, %s8
    %p90 = scmp.lt.s32.totalorder %s8, 3
    %p91 = pnand %p89, %p90
    %p92 = pneg %p91
    // Predicated region
    $region9: #{_vone_forward_impl.1} parent=5 // pred_check
      _
    $region10: #{_vone_forward_impl.1} parent=5 // pred_check_branch
      %94 = sbr.rel (%p91) target = $region12
    $region11: #{_vone_forward_impl.1} parent=5 // pred_region
      %s95 = ssub.s32 %s8, 1
      // Predicated region
      $region13: #{_vone_forward_impl.1} parent=11 // pred_check
        %p96 = pneg %p55
      $region14: #{_vone_forward_impl.1} parent=11 // pred_check_branch
        %98 = sbr.rel (%p96) target = $region16
      $region15: #{_vone_forward_impl.1} parent=11 // pred_region
        _
      $region16: #{_vone_forward_impl.1} parent=11 // pred_fallthru
        _
    $region12: #{_vone_forward_impl.1} parent=5 // pred_fallthru
      _
    %p99 = scmp.lt.s32.totalorder %s8, 2
    // Predicated region
    $region17: #{_vone_forward_impl.1} parent=5 // pred_check
      %p100 = pneg %p99
    $region18: #{_vone_forward_impl.1} parent=5 // pred_check_branch
      %102 = sbr.rel (%p100) target = $region20
    $region19: #{_vone_forward_impl.1} parent=5 // pred_region
      // Predicated region
      $region21: #{_vone_forward_impl.1} parent=19 // pred_check
        %p103 = pneg %p28
      $region22: #{_vone_forward_impl.1} parent=19 // pred_check_branch
        %105 = sbr.rel (%p103) target = $region24
      $region23: #{_vone_forward_impl.1} parent=19 // pred_region
        %s106 = smul.u32 32, %s8
        %p107 = scmp.lt.s32.totalorder %s106, 63
        %s108 = scalar_select %p107, %s106, 63
        %s109 = smul.addr %s108, 4
        %s110 = scalar_lea.vmem %s0, %s109
        %s111 = smul.u32 32, %s8
      $region24: #{_vone_forward_impl.1} parent=19 // pred_fallthru
        _
    $region20: #{_vone_forward_impl.1} parent=5 // pred_fallthru
      _
    %p112 = scmp.le.s32.totalorder 1, %s8
    %p113 = scmp.lt.s32.totalorder %s8, 3
    %p114 = pnand %p112, %p113
    %p115 = pneg %p114
    // Predicated region
    $region25: #{_vone_forward_impl.1} parent=5 // pred_check
      _
    $region26: #{_vone_forward_impl.1} parent=5 // pred_check_branch
      %117 = sbr.rel (%p114) target = $region28
    $region27: #{_vone_forward_impl.1} parent=5 // pred_region
      %s118 = ssub.s32 %s8, 1
      %s119 = smul.u32 32, %s13
      %p120 = scmp.lt.s32.totalorder %s119, 63
      %s121 = scalar_select %p120, %s119, 63
      %s122 = smul.addr %s121, 4
      %s123 = scalar_lea.vmem %s0, %s122
      %p124 = pneg %p34
      %p125 = pneg %p31
      %p126 = pneg %p55
      %p127 = pneg %p52
      %p128 = pneg %p81
      %p129 = pneg %p78
      %s130 = smul.u32 32, %s13
      %p131 = scmp.lt.s32.totalorder %s130, 63
      %s132 = scalar_select %p131, %s130, 63
      %s133 = smul.addr %s132, 8
      %s134 = scalar_lea.vmem %s2, %s133
      %s135 = smul.u32 32, %s13
      %p136 = scmp.lt.s32.totalorder %s135, 63
      %s137 = scalar_select %p136, %s135, 63
      %s138 = smul.addr %s137, 4
      %s139 = scalar_lea.vmem %s0, %s138
      %s140 = smul.u32 32, %s13
      %s141 = smul.u32 32, %s13
      %p142 = scmp.lt.s32.totalorder %s141, 63
      %s143 = scalar_select %p142, %s141, 63
      %s144 = smul.addr %s143, 8
      %s145 = scalar_lea.vmem %s2, %s144
      %s146 = smul.u32 32, %s13
      %v148 = vld [vmem:[%s139] sm:$0xf]
      %v149 = vld [vmem:[%s139 + $0x4] sm:$0xf]
      %v150 = vld [vmem:[%s139 + $0x8] sm:$0xf]
      %v151 = vld [vmem:[%s139 + $0xc] sm:$0xf]
      %v152 = vld [vmem:[%s139 + $0x10] sm:$0xf]
      %v153 = vld [vmem:[%s139 + $0x14] sm:$0xf]
      %v154 = vld [vmem:[%s139 + $0x18] sm:$0xf]
      %v155 = vld [vmem:[%s139 + $0x1c] sm:$0xf]
      %v156 = vld [vmem:[%s139 + $0x20] sm:$0xf]
      %v157 = vld [vmem:[%s139 + $0x24] sm:$0xf]
      %v158 = vld [vmem:[%s139 + $0x28] sm:$0xf]
      %v159 = vld [vmem:[%s139 + $0x2c] sm:$0xf]
      %v160 = vld [vmem:[%s139 + $0x30] sm:$0xf]
      %v161 = vld [vmem:[%s139 + $0x34] sm:$0xf]
      %v162 = vld [vmem:[%s139 + $0x38] sm:$0xf]
      %v163 = vld [vmem:[%s139 + $0x3c] sm:$0xf]
      %v164 = vld [vmem:[%s139 + $0x40] sm:$0xf]
      %v165 = vld [vmem:[%s139 + $0x44] sm:$0xf]
      %v166 = vld [vmem:[%s139 + $0x48] sm:$0xf]
      %v167 = vld [vmem:[%s139 + $0x4c] sm:$0xf]
      %v168 = vld [vmem:[%s139 + $0x50] sm:$0xf]
      %v169 = vld [vmem:[%s139 + $0x54] sm:$0xf]
      %v170 = vld [vmem:[%s139 + $0x58] sm:$0xf]
      %v171 = vld [vmem:[%s139 + $0x5c] sm:$0xf]
      %v172 = vld [vmem:[%s139 + $0x60] sm:$0xf]
      %v173 = vld [vmem:[%s139 + $0x64] sm:$0xf]
      %v174 = vld [vmem:[%s139 + $0x68] sm:$0xf]
      %v175 = vld [vmem:[%s139 + $0x6c] sm:$0xf]
      %v176 = vld [vmem:[%s139 + $0x70] sm:$0xf]
      %v177 = vld [vmem:[%s139 + $0x74] sm:$0xf]
      %v178 = vld [vmem:[%s139 + $0x78] sm:$0xf]
      %v179 = vld [vmem:[%s139 + $0x7c] sm:$0xf]
      %v180 = vld [vmem:[%s1] sm:$0xff]
      %v181 = vld [vmem:[%s1 + $0x8] sm:$0xff]
      %v182 = vld [vmem:[%s1 + $0x10] sm:$0xff]
      %v183 = vld [vmem:[%s1 + $0x18] sm:$0xff]
      %v184 = vld [vmem:[%s1 + $0x20] sm:$0xff]
      %v185 = vld [vmem:[%s1 + $0x28] sm:$0xff]
      %v186 = vld [vmem:[%s1 + $0x30] sm:$0xff]
      %v187 = vld [vmem:[%s1 + $0x38] sm:$0xff]
      %v188 = vld [vmem:[%s1 + $0x40] sm:$0xff]
      %v189 = vld [vmem:[%s1 + $0x48] sm:$0xff]
      %v190 = vld [vmem:[%s1 + $0x50] sm:$0xff]
      %v191 = vld [vmem:[%s1 + $0x58] sm:$0xff]
      %v192 = vld [vmem:[%s1 + $0x60] sm:$0xff]
      %v193 = vld [vmem:[%s1 + $0x68] sm:$0xff]
      %v194 = vld [vmem:[%s1 + $0x70] sm:$0xff]
      %v195 = vld [vmem:[%s1 + $0x78] sm:$0xff]
      %v228 = vunpack.c.l.b16 %v148
      %v229 = vunpack.c.l.b16 %v149
      %v230 = vunpack.c.l.b16 %v150
      %v231 = vunpack.c.l.b16 %v151
      %v232 = vunpack.c.l.b16 %v152
      %v233 = vunpack.c.l.b16 %v153
      %v234 = vunpack.c.l.b16 %v154
      %v235 = vunpack.c.l.b16 %v155
      %v236 = vunpack.c.l.b16 %v156
      %v237 = vunpack.c.l.b16 %v157
      %v238 = vunpack.c.l.b16 %v158
      %v239 = vunpack.c.l.b16 %v159
      %v240 = vunpack.c.l.b16 %v160
      %v241 = vunpack.c.l.b16 %v161
      %v242 = vunpack.c.l.b16 %v162
      %v243 = vunpack.c.l.b16 %v163
      %v244 = vunpack.c.l.b16 %v164
      %v245 = vunpack.c.l.b16 %v165
      %v246 = vunpack.c.l.b16 %v166
      %v247 = vunpack.c.l.b16 %v167
      %v248 = vunpack.c.l.b16 %v168
      %v249 = vunpack.c.l.b16 %v169
      %v250 = vunpack.c.l.b16 %v170
      %v251 = vunpack.c.l.b16 %v171
      %v252 = vunpack.c.l.b16 %v172
      %v253 = vunpack.c.l.b16 %v173
      %v254 = vunpack.c.l.b16 %v174
      %v255 = vunpack.c.l.b16 %v175
      %v256 = vunpack.c.l.b16 %v176
      %v257 = vunpack.c.l.b16 %v177
      %v258 = vunpack.c.l.b16 %v178
      %v259 = vunpack.c.l.b16 %v179
      %v260 = vpack.c.b16 %v229, %v228
      %v261 = vpack.c.b16 %v231, %v230
      %v262 = vpack.c.b16 %v233, %v232
      %v263 = vpack.c.b16 %v235, %v234
      %v264 = vpack.c.b16 %v237, %v236
      %v265 = vpack.c.b16 %v239, %v238
      %v266 = vpack.c.b16 %v241, %v240
      %v267 = vpack.c.b16 %v243, %v242
      %v268 = vpack.c.b16 %v245, %v244
      %v269 = vpack.c.b16 %v247, %v246
      %v270 = vpack.c.b16 %v249, %v248
      %v271 = vpack.c.b16 %v251, %v250
      %v272 = vpack.c.b16 %v253, %v252
      %v273 = vpack.c.b16 %v255, %v254
      %v274 = vpack.c.b16 %v257, %v256
      %v275 = vpack.c.b16 %v259, %v258
      %v308 = vunpack.c.l.b16 %v180
      %v309 = vunpack.c.h.b16 %v180
      %v310 = vunpack.c.l.b16 %v181
      %v311 = vunpack.c.h.b16 %v181
      %v312 = vunpack.c.l.b16 %v182
      %v313 = vunpack.c.h.b16 %v182
      %v314 = vunpack.c.l.b16 %v183
      %v315 = vunpack.c.h.b16 %v183
      %v316 = vunpack.c.l.b16 %v184
      %v317 = vunpack.c.h.b16 %v184
      %v318 = vunpack.c.l.b16 %v185
      %v319 = vunpack.c.h.b16 %v185
      %v320 = vunpack.c.l.b16 %v186
      %v321 = vunpack.c.h.b16 %v186
      %v322 = vunpack.c.l.b16 %v187
      %v323 = vunpack.c.h.b16 %v187
      %v324 = vunpack.c.l.b16 %v188
      %v325 = vunpack.c.h.b16 %v188
      %v326 = vunpack.c.l.b16 %v189
      %v327 = vunpack.c.h.b16 %v189
      %v328 = vunpack.c.l.b16 %v190
      %v329 = vunpack.c.h.b16 %v190
      %v330 = vunpack.c.l.b16 %v191
      %v331 = vunpack.c.h.b16 %v191
      %v332 = vunpack.c.l.b16 %v192
      %v333 = vunpack.c.h.b16 %v192
      %v334 = vunpack.c.l.b16 %v193
      %v335 = vunpack.c.h.b16 %v193
      %v336 = vunpack.c.l.b16 %v194
      %v337 = vunpack.c.h.b16 %v194
      %v338 = vunpack.c.l.b16 %v195
      %v339 = vunpack.c.h.b16 %v195
      %v340 = vpack.c.b16 %v310, %v308
      %v341 = vpack.c.b16 %v311, %v309
      %v342 = vpack.c.b16 %v314, %v312
      %v343 = vpack.c.b16 %v315, %v313
      %v344 = vpack.c.b16 %v318, %v316
      %v345 = vpack.c.b16 %v319, %v317
      %v346 = vpack.c.b16 %v322, %v320
      %v347 = vpack.c.b16 %v323, %v321
      %v348 = vpack.c.b16 %v326, %v324
      %v349 = vpack.c.b16 %v327, %v325
      %v350 = vpack.c.b16 %v330, %v328
      %v351 = vpack.c.b16 %v331, %v329
      %v352 = vpack.c.b16 %v334, %v332
      %v353 = vpack.c.b16 %v335, %v333
      %v354 = vpack.c.b16 %v338, %v336
      %v355 = vpack.c.b16 %v339, %v337
      %372 = vmatprep.subr.bf16.mxu0 %v341
      %373 = vmatpush1.bf16.msra.mxu0 %v340
      %374 = vmatprep.subr.bf16.mxu0 %v343
      %375 = vmatpush1.bf16.msra.mxu0 %v342
      %376 = vmatprep.subr.bf16.mxu0 %v345
      %377 = vmatpush1.bf16.msra.mxu0 %v344
      %378 = vmatprep.subr.bf16.mxu0 %v347
      %379 = vmatpush1.bf16.msra.mxu0 %v346
      %380 = vmatprep.subr.bf16.mxu0 %v349
      %381 = vmatpush1.bf16.msra.mxu0 %v348
      %382 = vmatprep.subr.bf16.mxu0 %v351
      %383 = vmatpush1.bf16.msra.mxu0 %v350
      %384 = vmatprep.subr.bf16.mxu0 %v353
      %385 = vmatpush1.bf16.msra.mxu0 %v352
      %386 = vmatprep.subr.bf16.mxu0 %v355
      %387 = vmatpush1.bf16.msra.mxu0 %v354
      %388 = vmatprep.subr.bf16.mxu0 0
      %389 = vmatpush1.bf16.msra.mxu0 0
      %390 = vmatprep.subr.bf16.mxu0 0
      %391 = vmatpush1.bf16.msra.mxu0 0
      %392 = vmatprep.subr.bf16.mxu0 0
      %393 = vmatpush1.bf16.msra.mxu0 0
      %394 = vmatprep.subr.bf16.mxu0 0
      %395 = vmatpush1.bf16.msra.mxu0 0
      %396 = vmatprep.subr.bf16.mxu0 0
      %397 = vmatpush1.bf16.msra.mxu0 0
      %398 = vmatprep.subr.bf16.mxu0 0
      %399 = vmatpush1.bf16.msra.mxu0 0
      %400 = vmatprep.subr.bf16.mxu0 0
      %401 = vmatpush1.bf16.msra.mxu0 0
      %402 = vmatprep.subr.bf16.mxu0 0
      %403 = vmatpush1.bf16.msra.mxu0 0
      %404 = vmatprep.mubr.bf16.mxu0 0
      %405 = vmatmul.mubr.bf16.gmra.mrb[0].mxu0 %v260
      %v406 = vpop.f32.mrb[0].mxu0
      %v407 = vadd.f32 0.0, %v406
      %v408 = vpop.f32.mrb[0].mxu0
      %v409 = vadd.f32 0.0, %v408
      %v410 = vpop.f32.mrb[0].mxu0
      %v411 = vadd.f32 0.0, %v410
      %v412 = vpop.f32.mrb[0].mxu0
      %v413 = vadd.f32 0.0, %v412
      %414 = vmatprep.mubr.bf16.mxu0 0
      %415 = vmatmul.mubr.bf16.gmra.mrb[0].mxu0 %v261
      %v416 = vpop.f32.mrb[0].mxu0
      %v417 = vadd.f32 0.0, %v416
      %v418 = vpop.f32.mrb[0].mxu0
      %v419 = vadd.f32 0.0, %v418
      %v420 = vpop.f32.mrb[0].mxu0
      %v421 = vadd.f32 0.0, %v420
      %v422 = vpop.f32.mrb[0].mxu0
      %v423 = vadd.f32 0.0, %v422
      %424 = vmatprep.mubr.bf16.mxu0 0
      %425 = vmatmul.mubr.bf16.gmra.mrb[0].mxu0 %v262
      %v426 = vpop.f32.mrb[0].mxu0
      %v427 = vadd.f32 0.0, %v426
      %v428 = vpop.f32.mrb[0].mxu0
      %v429 = vadd.f32 0.0, %v428
      %v430 = vpop.f32.mrb[0].mxu0
      %v431 = vadd.f32 0.0, %v430
      %v432 = vpop.f32.mrb[0].mxu0
      %v433 = vadd.f32 0.0, %v432
      %434 = vmatprep.mubr.bf16.mxu0 0
      %435 = vmatmul.mubr.bf16.gmra.mrb[0].mxu0 %v263
      %v436 = vpop.f32.mrb[0].mxu0
      %v437 = vadd.f32 0.0, %v436
      %v438 = vpop.f32.mrb[0].mxu0
      %v439 = vadd.f32 0.0, %v438
      %v440 = vpop.f32.mrb[0].mxu0
      %v441 = vadd.f32 0.0, %v440
      %v442 = vpop.f32.mrb[0].mxu0
      %v443 = vadd.f32 0.0, %v442
      %444 = vmatprep.mubr.bf16.mxu0 0
      %445 = vmatmul.mubr.bf16.gmra.mrb[0].mxu0 %v264
      %v446 = vpop.f32.mrb[0].mxu0
      %v447 = vadd.f32 0.0, %v446
      %v448 = vpop.f32.mrb[0].mxu0
      %v449 = vadd.f32 0.0, %v448
      %v450 = vpop.f32.mrb[0].mxu0
      %v451 = vadd.f32 0.0, %v450
      %v452 = vpop.f32.mrb[0].mxu0
      %v453 = vadd.f32 0.0, %v452
      %454 = vmatprep.mubr.bf16.mxu0 0
      %455 = vmatmul.mubr.bf16.gmra.mrb[0].mxu0 %v265
      %v456 = vpop.f32.mrb[0].mxu0
      %v457 = vadd.f32 0.0, %v456
      %v458 = vpop.f32.mrb[0].mxu0
      %v459 = vadd.f32 0.0, %v458
      %v460 = vpop.f32.mrb[0].mxu0
      %v461 = vadd.f32 0.0, %v460
      %v462 = vpop.f32.mrb[0].mxu0
      %v463 = vadd.f32 0.0, %v462
      %464 = vmatprep.mubr.bf16.mxu0 0
      %465 = vmatmul.mubr.bf16.gmra.mrb[0].mxu0 %v266
      %v466 = vpop.f32.mrb[0].mxu0
      %v467 = vadd.f32 0.0, %v466
      %v468 = vpop.f32.mrb[0].mxu0
      %v469 = vadd.f32 0.0, %v468
      %v470 = vpop.f32.mrb[0].mxu0
      %v471 = vadd.f32 0.0, %v470
      %v472 = vpop.f32.mrb[0].mxu0
      %v473 = vadd.f32 0.0, %v472
      %474 = vmatprep.mubr.bf16.mxu0 0
      %475 = vmatmul.mubr.bf16.gmra.mrb[0].mxu0 %v267
      %v476 = vpop.f32.mrb[0].mxu0
      %v477 = vadd.f32 0.0, %v476
      %v478 = vpop.f32.mrb[0].mxu0
      %v479 = vadd.f32 0.0, %v478
      %v480 = vpop.f32.mrb[0].mxu0
      %v481 = vadd.f32 0.0, %v480
      %v482 = vpop.f32.mrb[0].mxu0
      %v483 = vadd.f32 0.0, %v482
      %484 = vmatprep.mubr.bf16.mxu0 0
      %485 = vmatmul.mubr.bf16.gmra.mrb[0].mxu0 %v268
      %v486 = vpop.f32.mrb[0].mxu0
      %v487 = vadd.f32 0.0, %v486
      %v488 = vpop.f32.mrb[0].mxu0
      %v489 = vadd.f32 0.0, %v488
      %v490 = vpop.f32.mrb[0].mxu0
      %v491 = vadd.f32 0.0, %v490
      %v492 = vpop.f32.mrb[0].mxu0
      %v493 = vadd.f32 0.0, %v492
      %494 = vmatprep.mubr.bf16.mxu0 0
      %495 = vmatmul.mubr.bf16.gmra.mrb[0].mxu0 %v269
      %v496 = vpop.f32.mrb[0].mxu0
      %v497 = vadd.f32 0.0, %v496
      %v498 = vpop.f32.mrb[0].mxu0
      %v499 = vadd.f32 0.0, %v498
      %v500 = vpop.f32.mrb[0].mxu0
      %v501 = vadd.f32 0.0, %v500
      %v502 = vpop.f32.mrb[0].mxu0
      %v503 = vadd.f32 0.0, %v502
      %504 = vmatprep.mubr.bf16.mxu0 0
      %505 = vmatmul.mubr.bf16.gmra.mrb[0].mxu0 %v270
      %v506 = vpop.f32.mrb[0].mxu0
      %v507 = vadd.f32 0.0, %v506
      %v508 = vpop.f32.mrb[0].mxu0
      %v509 = vadd.f32 0.0, %v508
      %v510 = vpop.f32.mrb[0].mxu0
      %v511 = vadd.f32 0.0, %v510
      %v512 = vpop.f32.mrb[0].mxu0
      %v513 = vadd.f32 0.0, %v512
      %514 = vmatprep.mubr.bf16.mxu0 0
      %515 = vmatmul.mubr.bf16.gmra.mrb[0].mxu0 %v271
      %v516 = vpop.f32.mrb[0].mxu0
      %v517 = vadd.f32 0.0, %v516
      %v518 = vpop.f32.mrb[0].mxu0
      %v519 = vadd.f32 0.0, %v518
      %v520 = vpop.f32.mrb[0].mxu0
      %v521 = vadd.f32 0.0, %v520
      %v522 = vpop.f32.mrb[0].mxu0
      %v523 = vadd.f32 0.0, %v522
      %524 = vmatprep.mubr.bf16.mxu0 0
      %525 = vmatmul.mubr.bf16.gmra.mrb[0].mxu0 %v272
      %v526 = vpop.f32.mrb[0].mxu0
      %v527 = vadd.f32 0.0, %v526
      %v528 = vpop.f32.mrb[0].mxu0
      %v529 = vadd.f32 0.0, %v528
      %v530 = vpop.f32.mrb[0].mxu0
      %v531 = vadd.f32 0.0, %v530
      %v532 = vpop.f32.mrb[0].mxu0
      %v533 = vadd.f32 0.0, %v532
      %534 = vmatprep.mubr.bf16.mxu0 0
      %535 = vmatmul.mubr.bf16.gmra.mrb[0].mxu0 %v273
      %v536 = vpop.f32.mrb[0].mxu0
      %v537 = vadd.f32 0.0, %v536
      %v538 = vpop.f32.mrb[0].mxu0
      %v539 = vadd.f32 0.0, %v538
      %v540 = vpop.f32.mrb[0].mxu0
      %v541 = vadd.f32 0.0, %v540
      %v542 = vpop.f32.mrb[0].mxu0
      %v543 = vadd.f32 0.0, %v542
      %544 = vmatprep.mubr.bf16.mxu0 0
      %545 = vmatmul.mubr.bf16.gmra.mrb[0].mxu0 %v274
      %v546 = vpop.f32.mrb[0].mxu0
      %v547 = vadd.f32 0.0, %v546
      %v548 = vpop.f32.mrb[0].mxu0
      %v549 = vadd.f32 0.0, %v548
      %v550 = vpop.f32.mrb[0].mxu0
      %v551 = vadd.f32 0.0, %v550
      %v552 = vpop.f32.mrb[0].mxu0
      %v553 = vadd.f32 0.0, %v552
      %554 = vmatprep.mubr.bf16.mxu0 0
      %555 = vmatmul.mubr.bf16.gmra.mrb[0].mxu0 %v275
      %v556 = vpop.f32.mrb[0].mxu0
      %v557 = vadd.f32 0.0, %v556
      %v558 = vpop.f32.mrb[0].mxu0
      %v559 = vadd.f32 0.0, %v558
      %v560 = vpop.f32.mrb[0].mxu0
      %v561 = vadd.f32 0.0, %v560
      %v562 = vpop.f32.mrb[0].mxu0
      %v563 = vadd.f32 0.0, %v562
      %564 = vdwg.mxu0
      %v565 = vlaneseq
      %v566 = vand.u32 %v565, 127
      %vm567 = vcmp.lt.s32.totalorder %v566, 8
      %v568 = vmax.f32 %v407, 0.0
      %v569 = vmax.f32 %v411, 0.0
      %v570 = vmax.f32 %v417, 0.0
      %v571 = vmax.f32 %v421, 0.0
      %v572 = vmax.f32 %v427, 0.0
      %v573 = vmax.f32 %v431, 0.0
      %v574 = vmax.f32 %v437, 0.0
      %v575 = vmax.f32 %v441, 0.0
      %v576 = vmax.f32 %v447, 0.0
      %v577 = vmax.f32 %v451, 0.0
      %v578 = vmax.f32 %v457, 0.0
      %v579 = vmax.f32 %v461, 0.0
      %v580 = vmax.f32 %v467, 0.0
      %v581 = vmax.f32 %v471, 0.0
      %v582 = vmax.f32 %v477, 0.0
      %v583 = vmax.f32 %v481, 0.0
      %v584 = vmax.f32 %v487, 0.0
      %v585 = vmax.f32 %v491, 0.0
      %v586 = vmax.f32 %v497, 0.0
      %v587 = vmax.f32 %v501, 0.0
      %v588 = vmax.f32 %v507, 0.0
      %v589 = vmax.f32 %v511, 0.0
      %v590 = vmax.f32 %v517, 0.0
      %v591 = vmax.f32 %v521, 0.0
      %v592 = vmax.f32 %v527, 0.0
      %v593 = vmax.f32 %v531, 0.0
      %v594 = vmax.f32 %v537, 0.0
      %v595 = vmax.f32 %v541, 0.0
      %v596 = vmax.f32 %v547, 0.0
      %v597 = vmax.f32 %v551, 0.0
      %v598 = vmax.f32 %v557, 0.0
      %v599 = vmax.f32 %v561, 0.0
      %v600 = vmul.f32 %v407, %v407
      %v601 = vmul.f32 %v411, %v411
      %v602 = vmul.f32 %v417, %v417
      %v603 = vmul.f32 %v421, %v421
      %v604 = vmul.f32 %v427, %v427
      %v605 = vmul.f32 %v431, %v431
      %v606 = vmul.f32 %v437, %v437
      %v607 = vmul.f32 %v441, %v441
      %v608 = vmul.f32 %v447, %v447
      %v609 = vmul.f32 %v451, %v451
      %v610 = vmul.f32 %v457, %v457
      %v611 = vmul.f32 %v461, %v461
      %v612 = vmul.f32 %v467, %v467
      %v613 = vmul.f32 %v471, %v471
      %v614 = vmul.f32 %v477, %v477
      %v615 = vmul.f32 %v481, %v481
      %v616 = vmul.f32 %v487, %v487
      %v617 = vmul.f32 %v491, %v491
      %v618 = vmul.f32 %v497, %v497
      %v619 = vmul.f32 %v501, %v501
      %v620 = vmul.f32 %v507, %v507
      %v621 = vmul.f32 %v511, %v511
      %v622 = vmul.f32 %v517, %v517
      %v623 = vmul.f32 %v521, %v521
      %v624 = vmul.f32 %v527, %v527
      %v625 = vmul.f32 %v531, %v531
      %v626 = vmul.f32 %v537, %v537
      %v627 = vmul.f32 %v541, %v541
      %v628 = vmul.f32 %v547, %v547
      %v629 = vmul.f32 %v551, %v551
      %v630 = vmul.f32 %v557, %v557
      %v631 = vmul.f32 %v561, %v561
      %v632 = vmul.f32 %v409, %v409
      %v633 = vmul.f32 %v413, %v413
      %v634 = vmul.f32 %v419, %v419
      %v635 = vmul.f32 %v423, %v423
      %v636 = vmul.f32 %v429, %v429
      %v637 = vmul.f32 %v433, %v433
      %v638 = vmul.f32 %v439, %v439
      %v639 = vmul.f32 %v443, %v443
      %v640 = vmul.f32 %v449, %v449
      %v641 = vmul.f32 %v453, %v453
      %v642 = vmul.f32 %v459, %v459
      %v643 = vmul.f32 %v463, %v463
      %v644 = vmul.f32 %v469, %v469
      %v645 = vmul.f32 %v473, %v473
      %v646 = vmul.f32 %v479, %v479
      %v647 = vmul.f32 %v483, %v483
      %v648 = vmul.f32 %v489, %v489
      %v649 = vmul.f32 %v493, %v493
      %v650 = vmul.f32 %v499, %v499
      %v651 = vmul.f32 %v503, %v503
      %v652 = vmul.f32 %v509, %v509
      %v653 = vmul.f32 %v513, %v513
      %v654 = vmul.f32 %v519, %v519
      %v655 = vmul.f32 %v523, %v523
      %v656 = vmul.f32 %v529, %v529
      %v657 = vmul.f32 %v533, %v533
      %v658 = vmul.f32 %v539, %v539
      %v659 = vmul.f32 %v543, %v543
      %v660 = vmul.f32 %v549, %v549
      %v661 = vmul.f32 %v553, %v553
      %v662 = vmul.f32 %v559, %v559
      %v663 = vmul.f32 %v563, %v563
      %v664 = vadd.f32 %v600, %v632
      %v665 = vadd.f32 %v601, %v633
      %v666 = vadd.f32 %v602, %v634
      %v667 = vadd.f32 %v603, %v635
      %v668 = vadd.f32 %v604, %v636
      %v669 = vadd.f32 %v605, %v637
      %v670 = vadd.f32 %v606, %v638
      %v671 = vadd.f32 %v607, %v639
      %v672 = vadd.f32 %v608, %v640
      %v673 = vadd.f32 %v609, %v641
      %v674 = vadd.f32 %v610, %v642
      %v675 = vadd.f32 %v611, %v643
      %v676 = vadd.f32 %v612, %v644
      %v677 = vadd.f32 %v613, %v645
      %v678 = vadd.f32 %v614, %v646
      %v679 = vadd.f32 %v615, %v647
      %v680 = vadd.f32 %v616, %v648
      %v681 = vadd.f32 %v617, %v649
      %v682 = vadd.f32 %v618, %v650
      %v683 = vadd.f32 %v619, %v651
      %v684 = vadd.f32 %v620, %v652
      %v685 = vadd.f32 %v621, %v653
      %v686 = vadd.f32 %v622, %v654
      %v687 = vadd.f32 %v623, %v655
      %v688 = vadd.f32 %v624, %v656
      %v689 = vadd.f32 %v625, %v657
      %v690 = vadd.f32 %v626, %v658
      %v691 = vadd.f32 %v627, %v659
      %v692 = vadd.f32 %v628, %v660
      %v693 = vadd.f32 %v629, %v661
      %v694 = vadd.f32 %v630, %v662
      %v695 = vadd.f32 %v631, %v663
      %v696 = vrsqrt.pop %v664
      %v697 = vmul.f32 %v664, %v696
      %vm698 = vcmp.eq.f32.partialorder %v664, inf
      %v699 = vsel %vm698, %v664, %v697
      %vm700 = vcmp.eq.f32.partialorder %v664, 0.0
      %v701 = vand.u32 %v664, 2147483648
      %v702 = vsel %vm700, %v701, %v699
      %v703 = vrsqrt.pop %v665
      %v704 = vmul.f32 %v665, %v703
      %vm705 = vcmp.eq.f32.partialorder %v665, inf
      %v706 = vsel %vm705, %v665, %v704
      %vm707 = vcmp.eq.f32.partialorder %v665, 0.0
      %v708 = vand.u32 %v665, 2147483648
      %v709 = vsel %vm707, %v708, %v706
      %v710 = vrsqrt.pop %v666
      %v711 = vmul.f32 %v666, %v710
      %vm712 = vcmp.eq.f32.partialorder %v666, inf
      %v713 = vsel %vm712, %v666, %v711
      %vm714 = vcmp.eq.f32.partialorder %v666, 0.0
      %v715 = vand.u32 %v666, 2147483648
      %v716 = vsel %vm714, %v715, %v713
      %v717 = vrsqrt.pop %v667
      %v718 = vmul.f32 %v667, %v717
      %vm719 = vcmp.eq.f32.partialorder %v667, inf
      %v720 = vsel %vm719, %v667, %v718
      %vm721 = vcmp.eq.f32.partialorder %v667, 0.0
      %v722 = vand.u32 %v667, 2147483648
      %v723 = vsel %vm721, %v722, %v720
      %v724 = vrsqrt.pop %v668
      %v725 = vmul.f32 %v668, %v724
      %vm726 = vcmp.eq.f32.partialorder %v668, inf
      %v727 = vsel %vm726, %v668, %v725
      %vm728 = vcmp.eq.f32.partialorder %v668, 0.0
      %v729 = vand.u32 %v668, 2147483648
      %v730 = vsel %vm728, %v729, %v727
      %v731 = vrsqrt.pop %v669
      %v732 = vmul.f32 %v669, %v731
      %vm733 = vcmp.eq.f32.partialorder %v669, inf
      %v734 = vsel %vm733, %v669, %v732
      %vm735 = vcmp.eq.f32.partialorder %v669, 0.0
      %v736 = vand.u32 %v669, 2147483648
      %v737 = vsel %vm735, %v736, %v734
      %v738 = vrsqrt.pop %v670
      %v739 = vmul.f32 %v670, %v738
      %vm740 = vcmp.eq.f32.partialorder %v670, inf
      %v741 = vsel %vm740, %v670, %v739
      %vm742 = vcmp.eq.f32.partialorder %v670, 0.0
      %v743 = vand.u32 %v670, 2147483648
      %v744 = vsel %vm742, %v743, %v741
      %v745 = vrsqrt.pop %v671
      %v746 = vmul.f32 %v671, %v745
      %vm747 = vcmp.eq.f32.partialorder %v671, inf
      %v748 = vsel %vm747, %v671, %v746
      %vm749 = vcmp.eq.f32.partialorder %v671, 0.0
      %v750 = vand.u32 %v671, 2147483648
      %v751 = vsel %vm749, %v750, %v748
      %v752 = vrsqrt.pop %v672
      %v753 = vmul.f32 %v672, %v752
      %vm754 = vcmp.eq.f32.partialorder %v672, inf
      %v755 = vsel %vm754, %v672, %v753
      %vm756 = vcmp.eq.f32.partialorder %v672, 0.0
      %v757 = vand.u32 %v672, 2147483648
      %v758 = vsel %vm756, %v757, %v755
      %v759 = vrsqrt.pop %v673
      %v760 = vmul.f32 %v673, %v759
      %vm761 = vcmp.eq.f32.partialorder %v673, inf
      %v762 = vsel %vm761, %v673, %v760
      %vm763 = vcmp.eq.f32.partialorder %v673, 0.0
      %v764 = vand.u32 %v673, 2147483648
      %v765 = vsel %vm763, %v764, %v762
      %v766 = vrsqrt.pop %v674
      %v767 = vmul.f32 %v674, %v766
      %vm768 = vcmp.eq.f32.partialorder %v674, inf
      %v769 = vsel %vm768, %v674, %v767
      %vm770 = vcmp.eq.f32.partialorder %v674, 0.0
      %v771 = vand.u32 %v674, 2147483648
      %v772 = vsel %vm770, %v771, %v769
      %v773 = vrsqrt.pop %v675
      %v774 = vmul.f32 %v675, %v773
      %vm775 = vcmp.eq.f32.partialorder %v675, inf
      %v776 = vsel %vm775, %v675, %v774
      %vm777 = vcmp.eq.f32.partialorder %v675, 0.0
      %v778 = vand.u32 %v675, 2147483648
      %v779 = vsel %vm777, %v778, %v776
      %v780 = vrsqrt.pop %v676
      %v781 = vmul.f32 %v676, %v780
      %vm782 = vcmp.eq.f32.partialorder %v676, inf
      %v783 = vsel %vm782, %v676, %v781
      %vm784 = vcmp.eq.f32.partialorder %v676, 0.0
      %v785 = vand.u32 %v676, 2147483648
      %v786 = vsel %vm784, %v785, %v783
      %v787 = vrsqrt.pop %v677
      %v788 = vmul.f32 %v677, %v787
      %vm789 = vcmp.eq.f32.partialorder %v677, inf
      %v790 = vsel %vm789, %v677, %v788
      %vm791 = vcmp.eq.f32.partialorder %v677, 0.0
      %v792 = vand.u32 %v677, 2147483648
      %v793 = vsel %vm791, %v792, %v790
      %v794 = vrsqrt.pop %v678
      %v795 = vmul.f32 %v678, %v794
      %vm796 = vcmp.eq.f32.partialorder %v678, inf
      %v797 = vsel %vm796, %v678, %v795
      %vm798 = vcmp.eq.f32.partialorder %v678, 0.0
      %v799 = vand.u32 %v678, 2147483648
      %v800 = vsel %vm798, %v799, %v797
      %v801 = vrsqrt.pop %v679
      %v802 = vmul.f32 %v679, %v801
      %vm803 = vcmp.eq.f32.partialorder %v679, inf
      %v804 = vsel %vm803, %v679, %v802
      %vm805 = vcmp.eq.f32.partialorder %v679, 0.0
      %v806 = vand.u32 %v679, 2147483648
      %v807 = vsel %vm805, %v806, %v804
      %v808 = vrsqrt.pop %v680
      %v809 = vmul.f32 %v680, %v808
      %vm810 = vcmp.eq.f32.partialorder %v680, inf
      %v811 = vsel %vm810, %v680, %v809
      %vm812 = vcmp.eq.f32.partialorder %v680, 0.0
      %v813 = vand.u32 %v680, 2147483648
      %v814 = vsel %vm812, %v813, %v811
      %v815 = vrsqrt.pop %v681
      %v816 = vmul.f32 %v681, %v815
      %vm817 = vcmp.eq.f32.partialorder %v681, inf
      %v818 = vsel %vm817, %v681, %v816
      %vm819 = vcmp.eq.f32.partialorder %v681, 0.0
      %v820 = vand.u32 %v681, 2147483648
      %v821 = vsel %vm819, %v820, %v818
      %v822 = vrsqrt.pop %v682
      %v823 = vmul.f32 %v682, %v822
      %vm824 = vcmp.eq.f32.partialorder %v682, inf
      %v825 = vsel %vm824, %v682, %v823
      %vm826 = vcmp.eq.f32.partialorder %v682, 0.0
      %v827 = vand.u32 %v682, 2147483648
      %v828 = vsel %vm826, %v827, %v825
      %v829 = vrsqrt.pop %v683
      %v830 = vmul.f32 %v683, %v829
      %vm831 = vcmp.eq.f32.partialorder %v683, inf
      %v832 = vsel %vm831, %v683, %v830
      %vm833 = vcmp.eq.f32.partialorder %v683, 0.0
      %v834 = vand.u32 %v683, 2147483648
      %v835 = vsel %vm833, %v834, %v832
      %v836 = vrsqrt.pop %v684
      %v837 = vmul.f32 %v684, %v836
      %vm838 = vcmp.eq.f32.partialorder %v684, inf
      %v839 = vsel %vm838, %v684, %v837
      %vm840 = vcmp.eq.f32.partialorder %v684, 0.0
      %v841 = vand.u32 %v684, 2147483648
      %v842 = vsel %vm840, %v841, %v839
      %v843 = vrsqrt.pop %v685
      %v844 = vmul.f32 %v685, %v843
      %vm845 = vcmp.eq.f32.partialorder %v685, inf
      %v846 = vsel %vm845, %v685, %v844
      %vm847 = vcmp.eq.f32.partialorder %v685, 0.0
      %v848 = vand.u32 %v685, 2147483648
      %v849 = vsel %vm847, %v848, %v846
      %v850 = vrsqrt.pop %v686
      %v851 = vmul.f32 %v686, %v850
      %vm852 = vcmp.eq.f32.partialorder %v686, inf
      %v853 = vsel %vm852, %v686, %v851
      %vm854 = vcmp.eq.f32.partialorder %v686, 0.0
      %v855 = vand.u32 %v686, 2147483648
      %v856 = vsel %vm854, %v855, %v853
      %v857 = vrsqrt.pop %v687
      %v858 = vmul.f32 %v687, %v857
      %vm859 = vcmp.eq.f32.partialorder %v687, inf
      %v860 = vsel %vm859, %v687, %v858
      %vm861 = vcmp.eq.f32.partialorder %v687, 0.0
      %v862 = vand.u32 %v687, 2147483648
      %v863 = vsel %vm861, %v862, %v860
      %v864 = vrsqrt.pop %v688
      %v865 = vmul.f32 %v688, %v864
      %vm866 = vcmp.eq.f32.partialorder %v688, inf
      %v867 = vsel %vm866, %v688, %v865
      %vm868 = vcmp.eq.f32.partialorder %v688, 0.0
      %v869 = vand.u32 %v688, 2147483648
      %v870 = vsel %vm868, %v869, %v867
      %v871 = vrsqrt.pop %v689
      %v872 = vmul.f32 %v689, %v871
      %vm873 = vcmp.eq.f32.partialorder %v689, inf
      %v874 = vsel %vm873, %v689, %v872
      %vm875 = vcmp.eq.f32.partialorder %v689, 0.0
      %v876 = vand.u32 %v689, 2147483648
      %v877 = vsel %vm875, %v876, %v874
      %v878 = vrsqrt.pop %v690
      %v879 = vmul.f32 %v690, %v878
      %vm880 = vcmp.eq.f32.partialorder %v690, inf
      %v881 = vsel %vm880, %v690, %v879
      %vm882 = vcmp.eq.f32.partialorder %v690, 0.0
      %v883 = vand.u32 %v690, 2147483648
      %v884 = vsel %vm882, %v883, %v881
      %v885 = vrsqrt.pop %v691
      %v886 = vmul.f32 %v691, %v885
      %vm887 = vcmp.eq.f32.partialorder %v691, inf
      %v888 = vsel %vm887, %v691, %v886
      %vm889 = vcmp.eq.f32.partialorder %v691, 0.0
      %v890 = vand.u32 %v691, 2147483648
      %v891 = vsel %vm889, %v890, %v888
      %v892 = vrsqrt.pop %v692
      %v893 = vmul.f32 %v692, %v892
      %vm894 = vcmp.eq.f32.partialorder %v692, inf
      %v895 = vsel %vm894, %v692, %v893
      %vm896 = vcmp.eq.f32.partialorder %v692, 0.0
      %v897 = vand.u32 %v692, 2147483648
      %v898 = vsel %vm896, %v897, %v895
      %v899 = vrsqrt.pop %v693
      %v900 = vmul.f32 %v693, %v899
      %vm901 = vcmp.eq.f32.partialorder %v693, inf
      %v902 = vsel %vm901, %v693, %v900
      %vm903 = vcmp.eq.f32.partialorder %v693, 0.0
      %v904 = vand.u32 %v693, 2147483648
      %v905 = vsel %vm903, %v904, %v902
      %v906 = vrsqrt.pop %v694
      %v907 = vmul.f32 %v694, %v906
      %vm908 = vcmp.eq.f32.partialorder %v694, inf
      %v909 = vsel %vm908, %v694, %v907
      %vm910 = vcmp.eq.f32.partialorder %v694, 0.0
      %v911 = vand.u32 %v694, 2147483648
      %v912 = vsel %vm910, %v911, %v909
      %v913 = vrsqrt.pop %v695
      %v914 = vmul.f32 %v695, %v913
      %vm915 = vcmp.eq.f32.partialorder %v695, inf
      %v916 = vsel %vm915, %v695, %v914
      %vm917 = vcmp.eq.f32.partialorder %v695, 0.0
      %v918 = vand.u32 %v695, 2147483648
      %v919 = vsel %vm917, %v918, %v916
      %v920 = vsel %vm567, %v568, %v702
      %v921 = vsel %vm567, %v569, %v709
      %v922 = vsel %vm567, %v570, %v716
      %v923 = vsel %vm567, %v571, %v723
      %v924 = vsel %vm567, %v572, %v730
      %v925 = vsel %vm567, %v573, %v737
      %v926 = vsel %vm567, %v574, %v744
      %v927 = vsel %vm567, %v575, %v751
      %v928 = vsel %vm567, %v576, %v758
      %v929 = vsel %vm567, %v577, %v765
      %v930 = vsel %vm567, %v578, %v772
      %v931 = vsel %vm567, %v579, %v779
      %v932 = vsel %vm567, %v580, %v786
      %v933 = vsel %vm567, %v581, %v793
      %v934 = vsel %vm567, %v582, %v800
      %v935 = vsel %vm567, %v583, %v807
      %v936 = vsel %vm567, %v584, %v814
      %v937 = vsel %vm567, %v585, %v821
      %v938 = vsel %vm567, %v586, %v828
      %v939 = vsel %vm567, %v587, %v835
      %v940 = vsel %vm567, %v588, %v842
      %v941 = vsel %vm567, %v589, %v849
      %v942 = vsel %vm567, %v590, %v856
      %v943 = vsel %vm567, %v591, %v863
      %v944 = vsel %vm567, %v592, %v870
      %v945 = vsel %vm567, %v593, %v877
      %v946 = vsel %vm567, %v594, %v884
      %v947 = vsel %vm567, %v595, %v891
      %v948 = vsel %vm567, %v596, %v898
      %v949 = vsel %vm567, %v597, %v905
      %v950 = vsel %vm567, %v598, %v912
      %v951 = vsel %vm567, %v599, %v919
      %952 = vst [vmem:[%s145] sm:$0xff] %v920
      %953 = vst [vmem:[%s145 + $0x8] sm:$0xff] %v921
      %954 = vst [vmem:[%s145 + $0x10] sm:$0xff] %v922
      %955 = vst [vmem:[%s145 + $0x18] sm:$0xff] %v923
      %956 = vst [vmem:[%s145 + $0x20] sm:$0xff] %v924
      %957 = vst [vmem:[%s145 + $0x28] sm:$0xff] %v925
      %958 = vst [vmem:[%s145 + $0x30] sm:$0xff] %v926
      %959 = vst [vmem:[%s145 + $0x38] sm:$0xff] %v927
      %960 = vst [vmem:[%s145 + $0x40] sm:$0xff] %v928
      %961 = vst [vmem:[%s145 + $0x48] sm:$0xff] %v929
      %962 = vst [vmem:[%s145 + $0x50] sm:$0xff] %v930
      %963 = vst [vmem:[%s145 + $0x58] sm:$0xff] %v931
      %964 = vst [vmem:[%s145 + $0x60] sm:$0xff] %v932
      %965 = vst [vmem:[%s145 + $0x68] sm:$0xff] %v933
      %966 = vst [vmem:[%s145 + $0x70] sm:$0xff] %v934
      %967 = vst [vmem:[%s145 + $0x78] sm:$0xff] %v935
      %968 = vst [vmem:[%s145 + $0x80] sm:$0xff] %v936
      %969 = vst [vmem:[%s145 + $0x88] sm:$0xff] %v937
      %970 = vst [vmem:[%s145 + $0x90] sm:$0xff] %v938
      %971 = vst [vmem:[%s145 + $0x98] sm:$0xff] %v939
      %972 = vst [vmem:[%s145 + $0xa0] sm:$0xff] %v940
      %973 = vst [vmem:[%s145 + $0xa8] sm:$0xff] %v941
      %974 = vst [vmem:[%s145 + $0xb0] sm:$0xff] %v942
      %975 = vst [vmem:[%s145 + $0xb8] sm:$0xff] %v943
      %976 = vst [vmem:[%s145 + $0xc0] sm:$0xff] %v944
      %977 = vst [vmem:[%s145 + $0xc8] sm:$0xff] %v945
      %978 = vst [vmem:[%s145 + $0xd0] sm:$0xff] %v946
      %979 = vst [vmem:[%s145 + $0xd8] sm:$0xff] %v947
      %980 = vst [vmem:[%s145 + $0xe0] sm:$0xff] %v948
      %981 = vst [vmem:[%s145 + $0xe8] sm:$0xff] %v949
      %982 = vst [vmem:[%s145 + $0xf0] sm:$0xff] %v950
      %983 = vst [vmem:[%s145 + $0xf8] sm:$0xff] %v951
      %s984 = smul.u32 32, %s13
      %p985 = scmp.lt.s32.totalorder %s984, 63
      %s986 = scalar_select %p985, %s984, 63
      %s987 = smul.addr %s986, 8
      %s988 = scalar_lea.vmem %s2, %s987
      // Predicated region
      $region29: #{_vone_forward_impl.1} parent=27 // pred_check
        %p989 = pneg %p78
      $region30: #{_vone_forward_impl.1} parent=27 // pred_check_branch
        %991 = sbr.rel (%p989) target = $region32
      $region31: #{_vone_forward_impl.1} parent=27 // pred_region
        %s992 = smul.u32 32, %s13
      $region32: #{_vone_forward_impl.1} parent=27 // pred_fallthru
        _
    $region28: #{_vone_forward_impl.1} parent=5 // pred_fallthru
      _
    %p993 = scmp.le.s32.totalorder 2, %s8
    // Predicated region
    $region33: #{_vone_forward_impl.1} parent=5 // pred_check
      %p994 = pneg %p993
    $region34: #{_vone_forward_impl.1} parent=5 // pred_check_branch
      %996 = sbr.rel (%p994) target = $region36
    $region35: #{_vone_forward_impl.1} parent=5 // pred_region
      %s997 = ssub.s32 %s8, 2
      // Predicated region
      $region37: #{_vone_forward_impl.1} parent=35 // pred_check
        %p998 = pneg %p84
      $region38: #{_vone_forward_impl.1} parent=35 // pred_check_branch
        %1000 = sbr.rel (%p998) target = $region40
      $region39: #{_vone_forward_impl.1} parent=35 // pred_region
        %s1001 = smul.u32 32, %s14
        %p1002 = scmp.lt.s32.totalorder %s1001, 63
        %s1003 = scalar_select %p1002, %s1001, 63
        %s1004 = smul.addr %s1003, 8
        %s1005 = scalar_lea.vmem %s2, %s1004
      $region40: #{_vone_forward_impl.1} parent=35 // pred_fallthru
        _
    $region36: #{_vone_forward_impl.1} parent=5 // pred_fallthru
      _
  $region6: #{_vone_forward_impl.1} parent=0 // loop_footer
    %s12 = sadd.s32 1, %s8
  $region7: #{_vone_forward_impl.1} parent=0 // loop_footer_branch
    %7 = sbr.rel target = $region3
  $region8: #{_vone_forward_impl.1} parent=0 // loop_exit
    _

// kernel: _vone_forward_impl.1
$region0: #{_vone_forward_impl.1}
  #allocation0 [shape = 'u32[]', space=smem, size = 0x4, offset = 0x4, fixed_abs, tag = 'smem constant byte address 0x4 - core index']
  #allocation1 [shape = 'u32[144,128]{1,0:T(1,128)}', space=vmem, size = 0x12000, scoped, tag = 'internal scratch']
  %s0 = inlined_call_operand.vmem [shape: bf16[512,128], index: 0, kind: input, shape index: {}]
  %s1 = inlined_call_operand.vmem [shape: bf16[128,256], index: 1, kind: input, shape index: {}]
  %s2 = inlined_call_operand.vmem [shape: f32[512,128], index: 2, kind: output, shape index: {}]
  %s3 = sld [smem:[#allocation0]]
  $region41: #{_vone_forward_impl.1} parent=0
    _
  %s5 = ssub.s32 1, %s3
  %s6 = scalar_select 0, %s5, %s3
  loop: start=0, step=1, limit=4
  $region2: #{_vone_forward_impl.1} parent=0 // loop_pre_header
    _
  $region3: #{_vone_forward_impl.1} parent=0 // loop_header
    %s8 = sphi 0, %s12
    %p9 = scmp.ge.s32.totalorder %s8, 4
    %s18 = sphi 0, %s20
    %s21 = sphi 0, %s18
    %s22 = sphi 0, %s21
    %s38 = sphi 0, %s22
    %s42 = sphi 0, %s42
    %s44 = sphi 0, %s42
    %s45 = sphi 0, %s44
    %s59 = sphi 0, %s45
    %s65 = sphi 0, %s67
    %s68 = sphi 0, %s65
    %s69 = sphi 0, %s68
    %s85 = sphi 0, %s69
  $region4: #{_vone_forward_impl.1} parent=0 // loop_header_branch
    %11 = sbr.rel (%p9) target = $region8
  $region5: #{_vone_forward_impl.1} parent=0 // loop_body
    %s13 = ssub.s32 %s8, 1
    %s14 = ssub.s32 %s8, 2
    %s15 = sadd.s32 %s8, 1
    %s16 = ssub.s32 %s8, %s15
    %p17 = scmp.eq.s32.totalorder %s16, 0
    %s19 = sadd.s32 %s18, 1
    %s20 = scalar_select %p17, %s18, %s19
    %p23 = pneg %p17
    %p24 = scmp.eq.s32.totalorder %s8, 1
    %p25 = por %p23, %p24
    %p26 = scmp.ne.s32.totalorder %s18, %s21
    %p27 = scmp.eq.s32.totalorder %s8, 0
    %p28 = por %p26, %p27
    %p29 = scmp.ne.s32.totalorder %s18, %s21
    %p30 = scmp.eq.s32.totalorder %s13, 1
    %p31 = por %p29, %p30
    %p32 = scmp.ne.s32.totalorder %s21, %s22
    %p33 = scmp.eq.s32.totalorder %s13, 0
    %p34 = por %p32, %p33
    %p35 = scmp.ne.s32.totalorder %s21, %s22
    %p36 = scmp.eq.s32.totalorder %s14, 1
    %p37 = por %p35, %p36
    %p39 = scmp.ne.s32.totalorder %s22, %s38
    %p40 = scmp.eq.s32.totalorder %s14, 0
    %p41 = por %p39, %p40
    %s43 = sadd.s32 %s42, 1
    %p46 = scmp.eq.s32.totalorder %s8, 1
    %p47 = scmp.ne.s32.totalorder %s42, %s44
    %p48 = scmp.eq.s32.totalorder %s8, 0
    %p49 = por %p47, %p48
    %p50 = scmp.ne.s32.totalorder %s42, %s44
    %p51 = scmp.eq.s32.totalorder %s13, 1
    %p52 = por %p50, %p51
    %p53 = scmp.ne.s32.totalorder %s44, %s45
    %p54 = scmp.eq.s32.totalorder %s13, 0
    %p55 = por %p53, %p54
    %p56 = scmp.ne.s32.totalorder %s44, %s45
    %p57 = scmp.eq.s32.totalorder %s14, 1
    %p58 = por %p56, %p57
    %p60 = scmp.ne.s32.totalorder %s45, %s59
    %p61 = scmp.eq.s32.totalorder %s14, 0
    %p62 = por %p60, %p61
    %s63 = ssub.s32 %s8, %s15
    %p64 = scmp.eq.s32.totalorder %s63, 0
    %s66 = sadd.s32 %s65, 1
    %s67 = scalar_select %p64, %s65, %s66
    %p70 = pneg %p64
    %p71 = scmp.eq.s32.totalorder %s8, 1
    %p72 = por %p70, %p71
    %p73 = scmp.ne.s32.totalorder %s65, %s68
    %p74 = scmp.eq.s32.totalorder %s8, 0
    %p75 = por %p73, %p74
    %p76 = scmp.ne.s32.totalorder %s65, %s68
    %p77 = scmp.eq.s32.totalorder %s13, 1
    %p78 = por %p76, %p77
    %p79 = scmp.ne.s32.totalorder %s68, %s69
    %p80 = scmp.eq.s32.totalorder %s13, 0
    %p81 = por %p79, %p80
    %p82 = scmp.ne.s32.totalorder %s68, %s69
    %p83 = scmp.eq.s32.totalorder %s14, 1
    %p84 = por %p82, %p83
    %p86 = scmp.ne.s32.totalorder %s69, %s85
    %p87 = scmp.eq.s32.totalorder %s14, 0
    %p88 = por %p86, %p87
    %p89 = scmp.le.s32.totalorder 1, %s8
    %p90 = scmp.lt.s32.totalorder %s8, 3
    %p91 = pnand %p89, %p90
    %p92 = pneg %p91
    // Predicated region
    $region9: #{_vone_forward_impl.1} parent=5 // pred_check
      _
    $region10: #{_vone_forward_impl.1} parent=5 // pred_check_branch
      %94 = sbr.rel (%p91) target = $region12
    $region11: #{_vone_forward_impl.1} parent=5 // pred_region
      %s95 = ssub.s32 %s8, 1
      // Predicated region
      $region13: #{_vone_forward_impl.1} parent=11 // pred_check
        %p96 = pneg %p55
      $region14: #{_vone_forward_impl.1} parent=11 // pred_check_branch
        %98 = sbr.rel (%p96) target = $region16
      $region15: #{_vone_forward_impl.1} parent=11 // pred_region
        _
      $region16: #{_vone_forward_impl.1} parent=11 // pred_fallthru
        _
    $region12: #{_vone_forward_impl.1} parent=5 // pred_fallthru
      _
    %p99 = scmp.lt.s32.totalorder %s8, 2
    // Predicated region
    $region17: #{_vone_forward_impl.1} parent=5 // pred_check
      %p100 = pneg %p99
    $region18: #{_vone_forward_impl.1} parent=5 // pred_check_branch
      %102 = sbr.rel (%p100) target = $region20
    $region19: #{_vone_forward_impl.1} parent=5 // pred_region
      // Predicated region
      $region21: #{_vone_forward_impl.1} parent=19 // pred_check
        %p103 = pneg %p28
      $region22: #{_vone_forward_impl.1} parent=19 // pred_check_branch
        %105 = sbr.rel (%p103) target = $region24
      $region23: #{_vone_forward_impl.1} parent=19 // pred_region
        %s106 = smul.u32 32, %s8
        %p107 = scmp.lt.s32.totalorder %s106, 63
        %s108 = scalar_select %p107, %s106, 63
        %s109 = smul.addr %s108, 4
        %s110 = scalar_lea.vmem %s0, %s109
        %s111 = smul.u32 32, %s8
      $region24: #{_vone_forward_impl.1} parent=19 // pred_fallthru
        _
    $region20: #{_vone_forward_impl.1} parent=5 // pred_fallthru
      _
    %p112 = scmp.le.s32.totalorder 1, %s8
    %p113 = scmp.lt.s32.totalorder %s8, 3
    %p114 = pnand %p112, %p113
    %p115 = pneg %p114
    // Predicated region
    $region25: #{_vone_forward_impl.1} parent=5 // pred_check
      _
    $region26: #{_vone_forward_impl.1} parent=5 // pred_check_branch
      %117 = sbr.rel (%p114) target = $region28
    $region27: #{_vone_forward_impl.1} parent=5 // pred_region
      %s118 = ssub.s32 %s8, 1
      %s119 = smul.u32 32, %s13
      %p120 = scmp.lt.s32.totalorder %s119, 63
      %s121 = scalar_select %p120, %s119, 63
      %s122 = smul.addr %s121, 4
      %s123 = scalar_lea.vmem %s0, %s122
      %p124 = pneg %p34
      %p125 = pneg %p31
      %p126 = pneg %p55
      %p127 = pneg %p52
      %p128 = pneg %p81
      %p129 = pneg %p78
      %s130 = smul.u32 32, %s13
      %p131 = scmp.lt.s32.totalorder %s130, 63
      %s132 = scalar_select %p131, %s130, 63
      %s133 = smul.addr %s132, 8
      %s134 = scalar_lea.vmem %s2, %s133
      %s135 = smul.u32 32, %s13
      %p136 = scmp.lt.s32.totalorder %s135, 63
      %s137 = scalar_select %p136, %s135, 63
      %s138 = smul.addr %s137, 4
      %s139 = scalar_lea.vmem %s0, %s138
      %s140 = smul.u32 32, %s13
      %s141 = smul.u32 32, %s13
      %p142 = scmp.lt.s32.totalorder %s141, 63
      %s143 = scalar_select %p142, %s141, 63
      %s144 = smul.addr %s143, 8
      %s145 = scalar_lea.vmem %s2, %s144
      %s146 = smul.u32 32, %s13
      %v148 = vld [vmem:[%s139] sm:$0xf]
      %v149 = vld [vmem:[%s139 + $0x4] sm:$0xf]
      %v150 = vld [vmem:[%s139 + $0x8] sm:$0xf]
      %v151 = vld [vmem:[%s139 + $0xc] sm:$0xf]
      %v152 = vld [vmem:[%s139 + $0x10] sm:$0xf]
      %v153 = vld [vmem:[%s139 + $0x14] sm:$0xf]
      %v154 = vld [vmem:[%s139 + $0x18] sm:$0xf]
      %v155 = vld [vmem:[%s139 + $0x1c] sm:$0xf]
      %v156 = vld [vmem:[%s139 + $0x20] sm:$0xf]
      %v157 = vld [vmem:[%s139 + $0x24] sm:$0xf]
      %v158 = vld [vmem:[%s139 + $0x28] sm:$0xf]
      %v159 = vld [vmem:[%s139 + $0x2c] sm:$0xf]
      %v160 = vld [vmem:[%s139 + $0x30] sm:$0xf]
      %v161 = vld [vmem:[%s139 + $0x34] sm:$0xf]
      %v162 = vld [vmem:[%s139 + $0x38] sm:$0xf]
      %v163 = vld [vmem:[%s139 + $0x3c] sm:$0xf]
      %v164 = vld [vmem:[%s139 + $0x40] sm:$0xf]
      %v165 = vld [vmem:[%s139 + $0x44] sm:$0xf]
      %v166 = vld [vmem:[%s139 + $0x48] sm:$0xf]
      %v167 = vld [vmem:[%s139 + $0x4c] sm:$0xf]
      %v168 = vld [vmem:[%s139 + $0x50] sm:$0xf]
      %v169 = vld [vmem:[%s139 + $0x54] sm:$0xf]
      %v170 = vld [vmem:[%s139 + $0x58] sm:$0xf]
      %v171 = vld [vmem:[%s139 + $0x5c] sm:$0xf]
      %v172 = vld [vmem:[%s139 + $0x60] sm:$0xf]
      %v173 = vld [vmem:[%s139 + $0x64] sm:$0xf]
      %v174 = vld [vmem:[%s139 + $0x68] sm:$0xf]
      %v175 = vld [vmem:[%s139 + $0x6c] sm:$0xf]
      %v176 = vld [vmem:[%s139 + $0x70] sm:$0xf]
      %v177 = vld [vmem:[%s139 + $0x74] sm:$0xf]
      %v178 = vld [vmem:[%s139 + $0x78] sm:$0xf]
      %v179 = vld [vmem:[%s139 + $0x7c] sm:$0xf]
      %v180 = vld [vmem:[%s1] sm:$0xff]
      %v181 = vld [vmem:[%s1 + $0x8] sm:$0xff]
      %v182 = vld [vmem:[%s1 + $0x10] sm:$0xff]
      %v183 = vld [vmem:[%s1 + $0x18] sm:$0xff]
      %v184 = vld [vmem:[%s1 + $0x20] sm:$0xff]
      %v185 = vld [vmem:[%s1 + $0x28] sm:$0xff]
      %v186 = vld [vmem:[%s1 + $0x30] sm:$0xff]
      %v187 = vld [vmem:[%s1 + $0x38] sm:$0xff]
      %v188 = vld [vmem:[%s1 + $0x40] sm:$0xff]
      %v189 = vld [vmem:[%s1 + $0x48] sm:$0xff]
      %v190 = vld [vmem:[%s1 + $0x50] sm:$0xff]
      %v191 = vld [vmem:[%s1 + $0x58] sm:$0xff]
      %v192 = vld [vmem:[%s1 + $0x60] sm:$0xff]
      %v193 = vld [vmem:[%s1 + $0x68] sm:$0xff]
      %v194 = vld [vmem:[%s1 + $0x70] sm:$0xff]
      %v195 = vld [vmem:[%s1 + $0x78] sm:$0xff]
      %v228 = vunpack.c.l.b16 %v148
      %v229 = vunpack.c.l.b16 %v149
      %v230 = vunpack.c.l.b16 %v150
      %v231 = vunpack.c.l.b16 %v151
      %v232 = vunpack.c.l.b16 %v152
      %v233 = vunpack.c.l.b16 %v153
      %v234 = vunpack.c.l.b16 %v154
      %v235 = vunpack.c.l.b16 %v155
      %v236 = vunpack.c.l.b16 %v156
      %v237 = vunpack.c.l.b16 %v157
      %v238 = vunpack.c.l.b16 %v158
      %v239 = vunpack.c.l.b16 %v159
      %v240 = vunpack.c.l.b16 %v160
      %v241 = vunpack.c.l.b16 %v161
      %v242 = vunpack.c.l.b16 %v162
      %v243 = vunpack.c.l.b16 %v163
      %v244 = vunpack.c.l.b16 %v164
      %v245 = vunpack.c.l.b16 %v165
      %v246 = vunpack.c.l.b16 %v166
      %v247 = vunpack.c.l.b16 %v167
      %v248 = vunpack.c.l.b16 %v168
      %v249 = vunpack.c.l.b16 %v169
      %v250 = vunpack.c.l.b16 %v170
      %v251 = vunpack.c.l.b16 %v171
      %v252 = vunpack.c.l.b16 %v172
      %v253 = vunpack.c.l.b16 %v173
      %v254 = vunpack.c.l.b16 %v174
      %v255 = vunpack.c.l.b16 %v175
      %v256 = vunpack.c.l.b16 %v176
      %v257 = vunpack.c.l.b16 %v177
      %v258 = vunpack.c.l.b16 %v178
      %v259 = vunpack.c.l.b16 %v179
      %v260 = vpack.c.b16 %v229, %v228
      %v261 = vpack.c.b16 %v231, %v230
      %v262 = vpack.c.b16 %v233, %v232
      %v263 = vpack.c.b16 %v235, %v234
      %v264 = vpack.c.b16 %v237, %v236
      %v265 = vpack.c.b16 %v239, %v238
      %v266 = vpack.c.b16 %v241, %v240
      %v267 = vpack.c.b16 %v243, %v242
      %v268 = vpack.c.b16 %v245, %v244
      %v269 = vpack.c.b16 %v247, %v246
      %v270 = vpack.c.b16 %v249, %v248
      %v271 = vpack.c.b16 %v251, %v250
      %v272 = vpack.c.b16 %v253, %v252
      %v273 = vpack.c.b16 %v255, %v254
      %v274 = vpack.c.b16 %v257, %v256
      %v275 = vpack.c.b16 %v259, %v258
      %v308 = vunpack.c.l.b16 %v180
      %v309 = vunpack.c.h.b16 %v180
      %v310 = vunpack.c.l.b16 %v181
      %v311 = vunpack.c.h.b16 %v181
      %v312 = vunpack.c.l.b16 %v182
      %v313 = vunpack.c.h.b16 %v182
      %v314 = vunpack.c.l.b16 %v183
      %v315 = vunpack.c.h.b16 %v183
      %v316 = vunpack.c.l.b16 %v184
      %v317 = vunpack.c.h.b16 %v184
      %v318 = vunpack.c.l.b16 %v185
      %v319 = vunpack.c.h.b16 %v185
      %v320 = vunpack.c.l.b16 %v186
      %v321 = vunpack.c.h.b16 %v186
      %v322 = vunpack.c.l.b16 %v187
      %v323 = vunpack.c.h.b16 %v187
      %v324 = vunpack.c.l.b16 %v188
      %v325 = vunpack.c.h.b16 %v188
      %v326 = vunpack.c.l.b16 %v189
      %v327 = vunpack.c.h.b16 %v189
      %v328 = vunpack.c.l.b16 %v190
      %v329 = vunpack.c.h.b16 %v190
      %v330 = vunpack.c.l.b16 %v191
      %v331 = vunpack.c.h.b16 %v191
      %v332 = vunpack.c.l.b16 %v192
      %v333 = vunpack.c.h.b16 %v192
      %v334 = vunpack.c.l.b16 %v193
      %v335 = vunpack.c.h.b16 %v193
      %v336 = vunpack.c.l.b16 %v194
      %v337 = vunpack.c.h.b16 %v194
      %v338 = vunpack.c.l.b16 %v195
      %v339 = vunpack.c.h.b16 %v195
      %v340 = vpack.c.b16 %v310, %v308
      %v341 = vpack.c.b16 %v311, %v309
      %v342 = vpack.c.b16 %v314, %v312
      %v343 = vpack.c.b16 %v315, %v313
      %v344 = vpack.c.b16 %v318, %v316
      %v345 = vpack.c.b16 %v319, %v317
      %v346 = vpack.c.b16 %v322, %v320
      %v347 = vpack.c.b16 %v323, %v321
      %v348 = vpack.c.b16 %v326, %v324
      %v349 = vpack.c.b16 %v327, %v325
      %v350 = vpack.c.b16 %v330, %v328
      %v351 = vpack.c.b16 %v331, %v329
      %v352 = vpack.c.b16 %v334, %v332
      %v353 = vpack.c.b16 %v335, %v333
      %v354 = vpack.c.b16 %v338, %v336
      %v355 = vpack.c.b16 %v339, %v337
      %372 = vmatprep.subr.bf16.mxu0 %v341
      %373 = vmatpush1.bf16.msra.mxu0 %v340
      %374 = vmatprep.subr.bf16.mxu0 %v343
      %375 = vmatpush1.bf16.msra.mxu0 %v342
      %376 = vmatprep.subr.bf16.mxu0 %v345
      %377 = vmatpush1.bf16.msra.mxu0 %v344
      %378 = vmatprep.subr.bf16.mxu0 %v347
      %379 = vmatpush1.bf16.msra.mxu0 %v346
      %380 = vmatprep.subr.bf16.mxu0 %v349
      %381 = vmatpush1.bf16.msra.mxu0 %v348
      %382 = vmatprep.subr.bf16.mxu0 %v351
      %383 = vmatpush1.bf16.msra.mxu0 %v350
      %384 = vmatprep.subr.bf16.mxu0 %v353
      %385 = vmatpush1.bf16.msra.mxu0 %v352
      %386 = vmatprep.subr.bf16.mxu0 %v355
      %387 = vmatpush1.bf16.msra.mxu0 %v354
      %388 = vmatprep.subr.bf16.mxu0 0
      %389 = vmatpush1.bf16.msra.mxu0 0
      %390 = vmatprep.subr.bf16.mxu0 0
      %391 = vmatpush1.bf16.msra.mxu0 0
      %392 = vmatprep.subr.bf16.mxu0 0
      %393 = vmatpush1.bf16.msra.mxu0 0
      %394 = vmatprep.subr.bf16.mxu0 0
      %395 = vmatpush1.bf16.msra.mxu0 0
      %396 = vmatprep.subr.bf16.mxu0 0
      %397 = vmatpush1.bf16.msra.mxu0 0
      %398 = vmatprep.subr.bf16.mxu0 0
      %399 = vmatpush1.bf16.msra.mxu0 0
      %400 = vmatprep.subr.bf16.mxu0 0
      %401 = vmatpush1.bf16.msra.mxu0 0
      %402 = vmatprep.subr.bf16.mxu0 0
      %403 = vmatpush1.bf16.msra.mxu0 0
      %404 = vmatprep.mubr.bf16.mxu0 0
      %405 = vmatmul.mubr.bf16.gmra.mrb[0].mxu0 %v260
      %v406 = vpop.f32.mrb[0].mxu0
      %v407 = vadd.f32 0.0, %v406
      %v408 = vpop.f32.mrb[0].mxu0
      %v409 = vadd.f32 0.0, %v408
      %v410 = vpop.f32.mrb[0].mxu0
      %v411 = vadd.f32 0.0, %v410
      %v412 = vpop.f32.mrb[0].mxu0
      %v413 = vadd.f32 0.0, %v412
      %414 = vmatprep.mubr.bf16.mxu0 0
      %415 = vmatmul.mubr.bf16.gmra.mrb[0].mxu0 %v261
      %v416 = vpop.f32.mrb[0].mxu0
      %v417 = vadd.f32 0.0, %v416
      %v418 = vpop.f32.mrb[0].mxu0
      %v419 = vadd.f32 0.0, %v418
      %v420 = vpop.f32.mrb[0].mxu0
      %v421 = vadd.f32 0.0, %v420
      %v422 = vpop.f32.mrb[0].mxu0
      %v423 = vadd.f32 0.0, %v422
      %424 = vmatprep.mubr.bf16.mxu0 0
      %425 = vmatmul.mubr.bf16.gmra.mrb[0].mxu0 %v262
      %v426 = vpop.f32.mrb[0].mxu0
      %v427 = vadd.f32 0.0, %v426
      %v428 = vpop.f32.mrb[0].mxu0
      %v429 = vadd.f32 0.0, %v428
      %v430 = vpop.f32.mrb[0].mxu0
      %v431 = vadd.f32 0.0, %v430
      %v432 = vpop.f32.mrb[0].mxu0
      %v433 = vadd.f32 0.0, %v432
      %434 = vmatprep.mubr.bf16.mxu0 0
      %435 = vmatmul.mubr.bf16.gmra.mrb[0].mxu0 %v263
      %v436 = vpop.f32.mrb[0].mxu0
      %v437 = vadd.f32 0.0, %v436
      %v438 = vpop.f32.mrb[0].mxu0
      %v439 = vadd.f32 0.0, %v438
      %v440 = vpop.f32.mrb[0].mxu0
      %v441 = vadd.f32 0.0, %v440
      %v442 = vpop.f32.mrb[0].mxu0
      %v443 = vadd.f32 0.0, %v442
      %444 = vmatprep.mubr.bf16.mxu0 0
      %445 = vmatmul.mubr.bf16.gmra.mrb[0].mxu0 %v264
      %v446 = vpop.f32.mrb[0].mxu0
      %v447 = vadd.f32 0.0, %v446
      %v448 = vpop.f32.mrb[0].mxu0
      %v449 = vadd.f32 0.0, %v448
      %v450 = vpop.f32.mrb[0].mxu0
      %v451 = vadd.f32 0.0, %v450
      %v452 = vpop.f32.mrb[0].mxu0
      %v453 = vadd.f32 0.0, %v452
      %454 = vmatprep.mubr.bf16.mxu0 0
      %455 = vmatmul.mubr.bf16.gmra.mrb[0].mxu0 %v265
      %v456 = vpop.f32.mrb[0].mxu0
      %v457 = vadd.f32 0.0, %v456
      %v458 = vpop.f32.mrb[0].mxu0
      %v459 = vadd.f32 0.0, %v458
      %v460 = vpop.f32.mrb[0].mxu0
      %v461 = vadd.f32 0.0, %v460
      %v462 = vpop.f32.mrb[0].mxu0
      %v463 = vadd.f32 0.0, %v462
      %464 = vmatprep.mubr.bf16.mxu0 0
      %465 = vmatmul.mubr.bf16.gmra.mrb[0].mxu0 %v266
      %v466 = vpop.f32.mrb[0].mxu0
      %v467 = vadd.f32 0.0, %v466
      %v468 = vpop.f32.mrb[0].mxu0
      %v469 = vadd.f32 0.0, %v468
      %v470 = vpop.f32.mrb[0].mxu0
      %v471 = vadd.f32 0.0, %v470
      %v472 = vpop.f32.mrb[0].mxu0
      %v473 = vadd.f32 0.0, %v472
      %474 = vmatprep.mubr.bf16.mxu0 0
      %475 = vmatmul.mubr.bf16.gmra.mrb[0].mxu0 %v267
      %v476 = vpop.f32.mrb[0].mxu0
      %v477 = vadd.f32 0.0, %v476
      %v478 = vpop.f32.mrb[0].mxu0
      %v479 = vadd.f32 0.0, %v478
      %v480 = vpop.f32.mrb[0].mxu0
      %v481 = vadd.f32 0.0, %v480
      %v482 = vpop.f32.mrb[0].mxu0
      %v483 = vadd.f32 0.0, %v482
      %484 = vmatprep.mubr.bf16.mxu0 0
      %485 = vmatmul.mubr.bf16.gmra.mrb[0].mxu0 %v268
      %v486 = vpop.f32.mrb[0].mxu0
      %v487 = vadd.f32 0.0, %v486
      %v488 = vpop.f32.mrb[0].mxu0
      %v489 = vadd.f32 0.0, %v488
      %v490 = vpop.f32.mrb[0].mxu0
      %v491 = vadd.f32 0.0, %v490
      %v492 = vpop.f32.mrb[0].mxu0
      %v493 = vadd.f32 0.0, %v492
      %494 = vmatprep.mubr.bf16.mxu0 0
      %495 = vmatmul.mubr.bf16.gmra.mrb[0].mxu0 %v269
      %v496 = vpop.f32.mrb[0].mxu0
      %v497 = vadd.f32 0.0, %v496
      %v498 = vpop.f32.mrb[0].mxu0
      %v499 = vadd.f32 0.0, %v498
      %v500 = vpop.f32.mrb[0].mxu0
      %v501 = vadd.f32 0.0, %v500
      %v502 = vpop.f32.mrb[0].mxu0
      %v503 = vadd.f32 0.0, %v502
      %504 = vmatprep.mubr.bf16.mxu0 0
      %505 = vmatmul.mubr.bf16.gmra.mrb[0].mxu0 %v270
      %v506 = vpop.f32.mrb[0].mxu0
      %v507 = vadd.f32 0.0, %v506
      %v508 = vpop.f32.mrb[0].mxu0
      %v509 = vadd.f32 0.0, %v508
      %v510 = vpop.f32.mrb[0].mxu0
      %v511 = vadd.f32 0.0, %v510
      %v512 = vpop.f32.mrb[0].mxu0
      %v513 = vadd.f32 0.0, %v512
      %514 = vmatprep.mubr.bf16.mxu0 0
      %515 = vmatmul.mubr.bf16.gmra.mrb[0].mxu0 %v271
      %v516 = vpop.f32.mrb[0].mxu0
      %v517 = vadd.f32 0.0, %v516
      %v518 = vpop.f32.mrb[0].mxu0
      %v519 = vadd.f32 0.0, %v518
      %v520 = vpop.f32.mrb[0].mxu0
      %v521 = vadd.f32 0.0, %v520
      %v522 = vpop.f32.mrb[0].mxu0
      %v523 = vadd.f32 0.0, %v522
      %524 = vmatprep.mubr.bf16.mxu0 0
      %525 = vmatmul.mubr.bf16.gmra.mrb[0].mxu0 %v272
      %v526 = vpop.f32.mrb[0].mxu0
      %v527 = vadd.f32 0.0, %v526
      %v528 = vpop.f32.mrb[0].mxu0
      %v529 = vadd.f32 0.0, %v528
      %v530 = vpop.f32.mrb[0].mxu0
      %v531 = vadd.f32 0.0, %v530
      %v532 = vpop.f32.mrb[0].mxu0
      %v533 = vadd.f32 0.0, %v532
      %534 = vmatprep.mubr.bf16.mxu0 0
      %535 = vmatmul.mubr.bf16.gmra.mrb[0].mxu0 %v273
      %v536 = vpop.f32.mrb[0].mxu0
      %v537 = vadd.f32 0.0, %v536
      %v538 = vpop.f32.mrb[0].mxu0
      %v539 = vadd.f32 0.0, %v538
      %v540 = vpop.f32.mrb[0].mxu0
      %v541 = vadd.f32 0.0, %v540
      %v542 = vpop.f32.mrb[0].mxu0
      %v543 = vadd.f32 0.0, %v542
      %544 = vmatprep.mubr.bf16.mxu0 0
      %545 = vmatmul.mubr.bf16.gmra.mrb[0].mxu0 %v274
      %v546 = vpop.f32.mrb[0].mxu0
      %v547 = vadd.f32 0.0, %v546
      %v548 = vpop.f32.mrb[0].mxu0
      %v549 = vadd.f32 0.0, %v548
      %v550 = vpop.f32.mrb[0].mxu0
      %v551 = vadd.f32 0.0, %v550
      %v552 = vpop.f32.mrb[0].mxu0
      %v553 = vadd.f32 0.0, %v552
      %554 = vmatprep.mubr.bf16.mxu0 0
      %555 = vmatmul.mubr.bf16.gmra.mrb[0].mxu0 %v275
      %v556 = vpop.f32.mrb[0].mxu0
      %v557 = vadd.f32 0.0, %v556
      %v558 = vpop.f32.mrb[0].mxu0
      %v559 = vadd.f32 0.0, %v558
      %v560 = vpop.f32.mrb[0].mxu0
      %v561 = vadd.f32 0.0, %v560
      %v562 = vpop.f32.mrb[0].mxu0
      %v563 = vadd.f32 0.0, %v562
      %564 = vdwg.mxu0
      %v565 = vlaneseq
      %v566 = vand.u32 %v565, 127
      %vm567 = vcmp.lt.s32.totalorder %v566, 8
      %v568 = vmax.f32 %v407, 0.0
      %v569 = vmax.f32 %v411, 0.0
      %v570 = vmax.f32 %v417, 0.0
      %v571 = vmax.f32 %v421, 0.0
      %v572 = vmax.f32 %v427, 0.0
      %v573 = vmax.f32 %v431, 0.0
      %v574 = vmax.f32 %v437, 0.0
      %v575 = vmax.f32 %v441, 0.0
      %v576 = vmax.f32 %v447, 0.0
      %v577 = vmax.f32 %v451, 0.0
      %v578 = vmax.f32 %v457, 0.0
      %v579 = vmax.f32 %v461, 0.0
      %v580 = vmax.f32 %v467, 0.0
      %v581 = vmax.f32 %v471, 0.0
      %v582 = vmax.f32 %v477, 0.0
      %v583 = vmax.f32 %v481, 0.0
      %v584 = vmax.f32 %v487, 0.0
      %v585 = vmax.f32 %v491, 0.0
      %v586 = vmax.f32 %v497, 0.0
      %v587 = vmax.f32 %v501, 0.0
      %v588 = vmax.f32 %v507, 0.0
      %v589 = vmax.f32 %v511, 0.0
      %v590 = vmax.f32 %v517, 0.0
      %v591 = vmax.f32 %v521, 0.0
      %v592 = vmax.f32 %v527, 0.0
      %v593 = vmax.f32 %v531, 0.0
      %v594 = vmax.f32 %v537, 0.0
      %v595 = vmax.f32 %v541, 0.0
      %v596 = vmax.f32 %v547, 0.0
      %v597 = vmax.f32 %v551, 0.0
      %v598 = vmax.f32 %v557, 0.0
      %v599 = vmax.f32 %v561, 0.0
      %v600 = vmul.f32 %v407, %v407
      %v601 = vmul.f32 %v411, %v411
      %v602 = vmul.f32 %v417, %v417
      %v603 = vmul.f32 %v421, %v421
      %v604 = vmul.f32 %v427, %v427
      %v605 = vmul.f32 %v431, %v431
      %v606 = vmul.f32 %v437, %v437
      %v607 = vmul.f32 %v441, %v441
      %v608 = vmul.f32 %v447, %v447
      %v609 = vmul.f32 %v451, %v451
      %v610 = vmul.f32 %v457, %v457
      %v611 = vmul.f32 %v461, %v461
      %v612 = vmul.f32 %v467, %v467
      %v613 = vmul.f32 %v471, %v471
      %v614 = vmul.f32 %v477, %v477
      %v615 = vmul.f32 %v481, %v481
      %v616 = vmul.f32 %v487, %v487
      %v617 = vmul.f32 %v491, %v491
      %v618 = vmul.f32 %v497, %v497
      %v619 = vmul.f32 %v501, %v501
      %v620 = vmul.f32 %v507, %v507
      %v621 = vmul.f32 %v511, %v511
      %v622 = vmul.f32 %v517, %v517
      %v623 = vmul.f32 %v521, %v521
      %v624 = vmul.f32 %v527, %v527
      %v625 = vmul.f32 %v531, %v531
      %v626 = vmul.f32 %v537, %v537
      %v627 = vmul.f32 %v541, %v541
      %v628 = vmul.f32 %v547, %v547
      %v629 = vmul.f32 %v551, %v551
      %v630 = vmul.f32 %v557, %v557
      %v631 = vmul.f32 %v561, %v561
      %v632 = vmul.f32 %v409, %v409
      %v633 = vmul.f32 %v413, %v413
      %v634 = vmul.f32 %v419, %v419
      %v635 = vmul.f32 %v423, %v423
      %v636 = vmul.f32 %v429, %v429
      %v637 = vmul.f32 %v433, %v433
      %v638 = vmul.f32 %v439, %v439
      %v639 = vmul.f32 %v443, %v443
      %v640 = vmul.f32 %v449, %v449
      %v641 = vmul.f32 %v453, %v453
      %v642 = vmul.f32 %v459, %v459
      %v643 = vmul.f32 %v463, %v463
      %v644 = vmul.f32 %v469, %v469
      %v645 = vmul.f32 %v473, %v473
      %v646 = vmul.f32 %v479, %v479
      %v647 = vmul.f32 %v483, %v483
      %v648 = vmul.f32 %v489, %v489
      %v649 = vmul.f32 %v493, %v493
      %v650 = vmul.f32 %v499, %v499
      %v651 = vmul.f32 %v503, %v503
      %v652 = vmul.f32 %v509, %v509
      %v653 = vmul.f32 %v513, %v513
      %v654 = vmul.f32 %v519, %v519
      %v655 = vmul.f32 %v523, %v523
      %v656 = vmul.f32 %v529, %v529
      %v657 = vmul.f32 %v533, %v533
      %v658 = vmul.f32 %v539, %v539
      %v659 = vmul.f32 %v543, %v543
      %v660 = vmul.f32 %v549, %v549
      %v661 = vmul.f32 %v553, %v553
      %v662 = vmul.f32 %v559, %v559
      %v663 = vmul.f32 %v563, %v563
      %v664 = vadd.f32 %v600, %v632
      %v665 = vadd.f32 %v601, %v633
      %v666 = vadd.f32 %v602, %v634
      %v667 = vadd.f32 %v603, %v635
      %v668 = vadd.f32 %v604, %v636
      %v669 = vadd.f32 %v605, %v637
      %v670 = vadd.f32 %v606, %v638
      %v671 = vadd.f32 %v607, %v639
      %v672 = vadd.f32 %v608, %v640
      %v673 = vadd.f32 %v609, %v641
      %v674 = vadd.f32 %v610, %v642
      %v675 = vadd.f32 %v611, %v643
      %v676 = vadd.f32 %v612, %v644
      %v677 = vadd.f32 %v613, %v645
      %v678 = vadd.f32 %v614, %v646
      %v679 = vadd.f32 %v615, %v647
      %v680 = vadd.f32 %v616, %v648
      %v681 = vadd.f32 %v617, %v649
      %v682 = vadd.f32 %v618, %v650
      %v683 = vadd.f32 %v619, %v651
      %v684 = vadd.f32 %v620, %v652
      %v685 = vadd.f32 %v621, %v653
      %v686 = vadd.f32 %v622, %v654
      %v687 = vadd.f32 %v623, %v655
      %v688 = vadd.f32 %v624, %v656
      %v689 = vadd.f32 %v625, %v657
      %v690 = vadd.f32 %v626, %v658
      %v691 = vadd.f32 %v627, %v659
      %v692 = vadd.f32 %v628, %v660
      %v693 = vadd.f32 %v629, %v661
      %v694 = vadd.f32 %v630, %v662
      %v695 = vadd.f32 %v631, %v663
      %v696 = vrsqrt.pop %v664
      %v697 = vmul.f32 %v664, %v696
      %vm698 = vcmp.eq.f32.partialorder %v664, inf
      %v699 = vsel %vm698, %v664, %v697
      %vm700 = vcmp.eq.f32.partialorder %v664, 0.0
      %v701 = vand.u32 %v664, 2147483648
      %v702 = vsel %vm700, %v701, %v699
      %v703 = vrsqrt.pop %v665
      %v704 = vmul.f32 %v665, %v703
      %vm705 = vcmp.eq.f32.partialorder %v665, inf
      %v706 = vsel %vm705, %v665, %v704
      %vm707 = vcmp.eq.f32.partialorder %v665, 0.0
      %v708 = vand.u32 %v665, 2147483648
      %v709 = vsel %vm707, %v708, %v706
      %v710 = vrsqrt.pop %v666
      %v711 = vmul.f32 %v666, %v710
      %vm712 = vcmp.eq.f32.partialorder %v666, inf
      %v713 = vsel %vm712, %v666, %v711
      %vm714 = vcmp.eq.f32.partialorder %v666, 0.0
      %v715 = vand.u32 %v666, 2147483648
      %v716 = vsel %vm714, %v715, %v713
      %v717 = vrsqrt.pop %v667
      %v718 = vmul.f32 %v667, %v717
      %vm719 = vcmp.eq.f32.partialorder %v667, inf
      %v720 = vsel %vm719, %v667, %v718
      %vm721 = vcmp.eq.f32.partialorder %v667, 0.0
      %v722 = vand.u32 %v667, 2147483648
      %v723 = vsel %vm721, %v722, %v720
      %v724 = vrsqrt.pop %v668
      %v725 = vmul.f32 %v668, %v724
      %vm726 = vcmp.eq.f32.partialorder %v668, inf
      %v727 = vsel %vm726, %v668, %v725
      %vm728 = vcmp.eq.f32.partialorder %v668, 0.0
      %v729 = vand.u32 %v668, 2147483648
      %v730 = vsel %vm728, %v729, %v727
      %v731 = vrsqrt.pop %v669
      %v732 = vmul.f32 %v669, %v731
      %vm733 = vcmp.eq.f32.partialorder %v669, inf
      %v734 = vsel %vm733, %v669, %v732
      %vm735 = vcmp.eq.f32.partialorder %v669, 0.0
      %v736 = vand.u32 %v669, 2147483648
      %v737 = vsel %vm735, %v736, %v734
      %v738 = vrsqrt.pop %v670
      %v739 = vmul.f32 %v670, %v738
      %vm740 = vcmp.eq.f32.partialorder %v670, inf
      %v741 = vsel %vm740, %v670, %v739
      %vm742 = vcmp.eq.f32.partialorder %v670, 0.0
      %v743 = vand.u32 %v670, 2147483648
      %v744 = vsel %vm742, %v743, %v741
      %v745 = vrsqrt.pop %v671
      %v746 = vmul.f32 %v671, %v745
      %vm747 = vcmp.eq.f32.partialorder %v671, inf
      %v748 = vsel %vm747, %v671, %v746
      %vm749 = vcmp.eq.f32.partialorder %v671, 0.0
      %v750 = vand.u32 %v671, 2147483648
      %v751 = vsel %vm749, %v750, %v748
      %v752 = vrsqrt.pop %v672
      %v753 = vmul.f32 %v672, %v752
      %vm754 = vcmp.eq.f32.partialorder %v672, inf
      %v755 = vsel %vm754, %v672, %v753
      %vm756 = vcmp.eq.f32.partialorder %v672, 0.0
      %v757 = vand.u32 %v672, 2147483648
      %v758 = vsel %vm756, %v757, %v755
      %v759 = vrsqrt.pop %v673
      %v760 = vmul.f32 %v673, %v759
      %vm761 = vcmp.eq.f32.partialorder %v673, inf
      %v762 = vsel %vm761, %v673, %v760
      %vm763 = vcmp.eq.f32.partialorder %v673, 0.0
      %v764 = vand.u32 %v673, 2147483648
      %v765 = vsel %vm763, %v764, %v762
      %v766 = vrsqrt.pop %v674
      %v767 = vmul.f32 %v674, %v766
      %vm768 = vcmp.eq.f32.partialorder %v674, inf
      %v769 = vsel %vm768, %v674, %v767
      %vm770 = vcmp.eq.f32.partialorder %v674, 0.0
      %v771 = vand.u32 %v674, 2147483648
      %v772 = vsel %vm770, %v771, %v769
      %v773 = vrsqrt.pop %v675
      %v774 = vmul.f32 %v675, %v773
      %vm775 = vcmp.eq.f32.partialorder %v675, inf
      %v776 = vsel %vm775, %v675, %v774
      %vm777 = vcmp.eq.f32.partialorder %v675, 0.0
      %v778 = vand.u32 %v675, 2147483648
      %v779 = vsel %vm777, %v778, %v776
      %v780 = vrsqrt.pop %v676
      %v781 = vmul.f32 %v676, %v780
      %vm782 = vcmp.eq.f32.partialorder %v676, inf
      %v783 = vsel %vm782, %v676, %v781
      %vm784 = vcmp.eq.f32.partialorder %v676, 0.0
      %v785 = vand.u32 %v676, 2147483648
      %v786 = vsel %vm784, %v785, %v783
      %v787 = vrsqrt.pop %v677
      %v788 = vmul.f32 %v677, %v787
      %vm789 = vcmp.eq.f32.partialorder %v677, inf
      %v790 = vsel %vm789, %v677, %v788
      %vm791 = vcmp.eq.f32.partialorder %v677, 0.0
      %v792 = vand.u32 %v677, 2147483648
      %v793 = vsel %vm791, %v792, %v790
      %v794 = vrsqrt.pop %v678
      %v795 = vmul.f32 %v678, %v794
      %vm796 = vcmp.eq.f32.partialorder %v678, inf
      %v797 = vsel %vm796, %v678, %v795
      %vm798 = vcmp.eq.f32.partialorder %v678, 0.0
      %v799 = vand.u32 %v678, 2147483648
      %v800 = vsel %vm798, %v799, %v797
      %v801 = vrsqrt.pop %v679
      %v802 = vmul.f32 %v679, %v801
      %vm803 = vcmp.eq.f32.partialorder %v679, inf
      %v804 = vsel %vm803, %v679, %v802
      %vm805 = vcmp.eq.f32.partialorder %v679, 0.0
      %v806 = vand.u32 %v679, 2147483648
      %v807 = vsel %vm805, %v806, %v804
      %v808 = vrsqrt.pop %v680
      %v809 = vmul.f32 %v680, %v808
      %vm810 = vcmp.eq.f32.partialorder %v680, inf
      %v811 = vsel %vm810, %v680, %v809
      %vm812 = vcmp.eq.f32.partialorder %v680, 0.0
      %v813 = vand.u32 %v680, 2147483648
      %v814 = vsel %vm812, %v813, %v811
      %v815 = vrsqrt.pop %v681
      %v816 = vmul.f32 %v681, %v815
      %vm817 = vcmp.eq.f32.partialorder %v681, inf
      %v818 = vsel %vm817, %v681, %v816
      %vm819 = vcmp.eq.f32.partialorder %v681, 0.0
      %v820 = vand.u32 %v681, 2147483648
      %v821 = vsel %vm819, %v820, %v818
      %v822 = vrsqrt.pop %v682
      %v823 = vmul.f32 %v682, %v822
      %vm824 = vcmp.eq.f32.partialorder %v682, inf
      %v825 = vsel %vm824, %v682, %v823
      %vm826 = vcmp.eq.f32.partialorder %v682, 0.0
      %v827 = vand.u32 %v682, 2147483648
      %v828 = vsel %vm826, %v827, %v825
      %v829 = vrsqrt.pop %v683
      %v830 = vmul.f32 %v683, %v829
      %vm831 = vcmp.eq.f32.partialorder %v683, inf
      %v832 = vsel %vm831, %v683, %v830
      %vm833 = vcmp.eq.f32.partialorder %v683, 0.0
      %v834 = vand.u32 %v683, 2147483648
      %v835 = vsel %vm833, %v834, %v832
      %v836 = vrsqrt.pop %v684
      %v837 = vmul.f32 %v684, %v836
      %vm838 = vcmp.eq.f32.partialorder %v684, inf
      %v839 = vsel %vm838, %v684, %v837
      %vm840 = vcmp.eq.f32.partialorder %v684, 0.0
      %v841 = vand.u32 %v684, 2147483648
      %v842 = vsel %vm840, %v841, %v839
      %v843 = vrsqrt.pop %v685
      %v844 = vmul.f32 %v685, %v843
      %vm845 = vcmp.eq.f32.partialorder %v685, inf
      %v846 = vsel %vm845, %v685, %v844
      %vm847 = vcmp.eq.f32.partialorder %v685, 0.0
      %v848 = vand.u32 %v685, 2147483648
      %v849 = vsel %vm847, %v848, %v846
      %v850 = vrsqrt.pop %v686
      %v851 = vmul.f32 %v686, %v850
      %vm852 = vcmp.eq.f32.partialorder %v686, inf
      %v853 = vsel %vm852, %v686, %v851
      %vm854 = vcmp.eq.f32.partialorder %v686, 0.0
      %v855 = vand.u32 %v686, 2147483648
      %v856 = vsel %vm854, %v855, %v853
      %v857 = vrsqrt.pop %v687
      %v858 = vmul.f32 %v687, %v857
      %vm859 = vcmp.eq.f32.partialorder %v687, inf
      %v860 = vsel %vm859, %v687, %v858
      %vm861 = vcmp.eq.f32.partialorder %v687, 0.0
      %v862 = vand.u32 %v687, 2147483648
      %v863 = vsel %vm861, %v862, %v860
      %v864 = vrsqrt.pop %v688
      %v865 = vmul.f32 %v688, %v864
      %vm866 = vcmp.eq.f32.partialorder %v688, inf
      %v867 = vsel %vm866, %v688, %v865
      %vm868 = vcmp.eq.f32.partialorder %v688, 0.0
      %v869 = vand.u32 %v688, 2147483648
      %v870 = vsel %vm868, %v869, %v867
      %v871 = vrsqrt.pop %v689
      %v872 = vmul.f32 %v689, %v871
      %vm873 = vcmp.eq.f32.partialorder %v689, inf
      %v874 = vsel %vm873, %v689, %v872
      %vm875 = vcmp.eq.f32.partialorder %v689, 0.0
      %v876 = vand.u32 %v689, 2147483648
      %v877 = vsel %vm875, %v876, %v874
      %v878 = vrsqrt.pop %v690
      %v879 = vmul.f32 %v690, %v878
      %vm880 = vcmp.eq.f32.partialorder %v690, inf
      %v881 = vsel %vm880, %v690, %v879
      %vm882 = vcmp.eq.f32.partialorder %v690, 0.0
      %v883 = vand.u32 %v690, 2147483648
      %v884 = vsel %vm882, %v883, %v881
      %v885 = vrsqrt.pop %v691
      %v886 = vmul.f32 %v691, %v885
      %vm887 = vcmp.eq.f32.partialorder %v691, inf
      %v888 = vsel %vm887, %v691, %v886
      %vm889 = vcmp.eq.f32.partialorder %v691, 0.0
      %v890 = vand.u32 %v691, 2147483648
      %v891 = vsel %vm889, %v890, %v888
      %v892 = vrsqrt.pop %v692
      %v893 = vmul.f32 %v692, %v892
      %vm894 = vcmp.eq.f32.partialorder %v692, inf
      %v895 = vsel %vm894, %v692, %v893
      %vm896 = vcmp.eq.f32.partialorder %v692, 0.0
      %v897 = vand.u32 %v692, 2147483648
      %v898 = vsel %vm896, %v897, %v895
      %v899 = vrsqrt.pop %v693
      %v900 = vmul.f32 %v693, %v899
      %vm901 = vcmp.eq.f32.partialorder %v693, inf
      %v902 = vsel %vm901, %v693, %v900
      %vm903 = vcmp.eq.f32.partialorder %v693, 0.0
      %v904 = vand.u32 %v693, 2147483648
      %v905 = vsel %vm903, %v904, %v902
      %v906 = vrsqrt.pop %v694
      %v907 = vmul.f32 %v694, %v906
      %vm908 = vcmp.eq.f32.partialorder %v694, inf
      %v909 = vsel %vm908, %v694, %v907
      %vm910 = vcmp.eq.f32.partialorder %v694, 0.0
      %v911 = vand.u32 %v694, 2147483648
      %v912 = vsel %vm910, %v911, %v909
      %v913 = vrsqrt.pop %v695
      %v914 = vmul.f32 %v695, %v913
      %vm915 = vcmp.eq.f32.partialorder %v695, inf
      %v916 = vsel %vm915, %v695, %v914
      %vm917 = vcmp.eq.f32.partialorder %v695, 0.0
      %v918 = vand.u32 %v695, 2147483648
      %v919 = vsel %vm917, %v918, %v916
      %v920 = vsel %vm567, %v568, %v702
      %v921 = vsel %vm567, %v569, %v709
      %v922 = vsel %vm567, %v570, %v716
      %v923 = vsel %vm567, %v571, %v723
      %v924 = vsel %vm567, %v572, %v730
      %v925 = vsel %vm567, %v573, %v737
      %v926 = vsel %vm567, %v574, %v744
      %v927 = vsel %vm567, %v575, %v751
      %v928 = vsel %vm567, %v576, %v758
      %v929 = vsel %vm567, %v577, %v765
      %v930 = vsel %vm567, %v578, %v772
      %v931 = vsel %vm567, %v579, %v779
      %v932 = vsel %vm567, %v580, %v786
      %v933 = vsel %vm567, %v581, %v793
      %v934 = vsel %vm567, %v582, %v800
      %v935 = vsel %vm567, %v583, %v807
      %v936 = vsel %vm567, %v584, %v814
      %v937 = vsel %vm567, %v585, %v821
      %v938 = vsel %vm567, %v586, %v828
      %v939 = vsel %vm567, %v587, %v835
      %v940 = vsel %vm567, %v588, %v842
      %v941 = vsel %vm567, %v589, %v849
      %v942 = vsel %vm567, %v590, %v856
      %v943 = vsel %vm567, %v591, %v863
      %v944 = vsel %vm567, %v592, %v870
      %v945 = vsel %vm567, %v593, %v877
      %v946 = vsel %vm567, %v594, %v884
      %v947 = vsel %vm567, %v595, %v891
      %v948 = vsel %vm567, %v596, %v898
      %v949 = vsel %vm567, %v597, %v905
      %v950 = vsel %vm567, %v598, %v912
      %v951 = vsel %vm567, %v599, %v919
      %952 = vst [vmem:[%s145] sm:$0xff] %v920
      %953 = vst [vmem:[%s145 + $0x8] sm:$0xff] %v921
      %954 = vst [vmem:[%s145 + $0x10] sm:$0xff] %v922
      %955 = vst [vmem:[%s145 + $0x18] sm:$0xff] %v923
      %956 = vst [vmem:[%s145 + $0x20] sm:$0xff] %v924
      %957 = vst [vmem:[%s145 + $0x28] sm:$0xff] %v925
      %958 = vst [vmem:[%s145 + $0x30] sm:$0xff] %v926
      %959 = vst [vmem:[%s145 + $0x38] sm:$0xff] %v927
      %960 = vst [vmem:[%s145 + $0x40] sm:$0xff] %v928
      %961 = vst [vmem:[%s145 + $0x48] sm:$0xff] %v929
      %962 = vst [vmem:[%s145 + $0x50] sm:$0xff] %v930
      %963 = vst [vmem:[%s145 + $0x58] sm:$0xff] %v931
      %964 = vst [vmem:[%s145 + $0x60] sm:$0xff] %v932
      %965 = vst [vmem:[%s145 + $0x68] sm:$0xff] %v933
      %966 = vst [vmem:[%s145 + $0x70] sm:$0xff] %v934
      %967 = vst [vmem:[%s145 + $0x78] sm:$0xff] %v935
      %968 = vst [vmem:[%s145 + $0x80] sm:$0xff] %v936
      %969 = vst [vmem:[%s145 + $0x88] sm:$0xff] %v937
      %970 = vst [vmem:[%s145 + $0x90] sm:$0xff] %v938
      %971 = vst [vmem:[%s145 + $0x98] sm:$0xff] %v939
      %972 = vst [vmem:[%s145 + $0xa0] sm:$0xff] %v940
      %973 = vst [vmem:[%s145 + $0xa8] sm:$0xff] %v941
      %974 = vst [vmem:[%s145 + $0xb0] sm:$0xff] %v942
      %975 = vst [vmem:[%s145 + $0xb8] sm:$0xff] %v943
      %976 = vst [vmem:[%s145 + $0xc0] sm:$0xff] %v944
      %977 = vst [vmem:[%s145 + $0xc8] sm:$0xff] %v945
      %978 = vst [vmem:[%s145 + $0xd0] sm:$0xff] %v946
      %979 = vst [vmem:[%s145 + $0xd8] sm:$0xff] %v947
      %980 = vst [vmem:[%s145 + $0xe0] sm:$0xff] %v948
      %981 = vst [vmem:[%s145 + $0xe8] sm:$0xff] %v949
      %982 = vst [vmem:[%s145 + $0xf0] sm:$0xff] %v950
      %983 = vst [vmem:[%s145 + $0xf8] sm:$0xff] %v951
      %s984 = smul.u32 32, %s13
      %p985 = scmp.lt.s32.totalorder %s984, 63
      %s986 = scalar_select %p985, %s984, 63
      %s987 = smul.addr %s986, 8
      %s988 = scalar_lea.vmem %s2, %s987
      // Predicated region
      $region29: #{_vone_forward_impl.1} parent=27 // pred_check
        %p989 = pneg %p78
      $region30: #{_vone_forward_impl.1} parent=27 // pred_check_branch
        %991 = sbr.rel (%p989) target = $region32
      $region31: #{_vone_forward_impl.1} parent=27 // pred_region
        %s992 = smul.u32 32, %s13
      $region32: #{_vone_forward_impl.1} parent=27 // pred_fallthru
        _
    $region28: #{_vone_forward_impl.1} parent=5 // pred_fallthru
      _
    %p993 = scmp.le.s32.totalorder 2, %s8
    // Predicated region
    $region33: #{_vone_forward_impl.1} parent=5 // pred_check
      %p994 = pneg %p993
    $region34: #{_vone_forward_impl.1} parent=5 // pred_check_branch
      %996 = sbr.rel (%p994) target = $region36
    $region35: #{_vone_forward_impl.1} parent=5 // pred_region
      %s997 = ssub.s32 %s8, 2
      // Predicated region
      $region37: #{_vone_forward_impl.1} parent=35 // pred_check
        %p998 = pneg %p84
      $region38: #{_vone_forward_impl.1} parent=35 // pred_check_branch
        %1000 = sbr.rel (%p998) target = $region40
      $region39: #{_vone_forward_impl.1} parent=35 // pred_region
        %s1001 = smul.u32 32, %s14
        %p1002 = scmp.lt.s32.totalorder %s1001, 63
        %s1003 = scalar_select %p1002, %s1001, 63
        %s1004 = smul.addr %s1003, 8
        %s1005 = scalar_lea.vmem %s2, %s1004
      $region40: #{_vone_forward_impl.1} parent=35 // pred_fallthru
        _
    $region36: #{_vone_forward_impl.1} parent=5 // pred_fallthru
      _
  $region6: #{_vone_forward_impl.1} parent=0 // loop_footer
    %s12 = sadd.s32 1, %s8
  $region7: #{_vone_forward_impl.1} parent=0 // loop_footer_branch
    %7 = sbr.rel target = $region3
  $region8: #{_vone_forward_impl.1} parent=0 // loop_exit
    _

</llo_original>
